<compile_context>
chip_gen: v7x
topology: tpu7x:2x2x1
jax: 0.10.0
libtpu: 0.0.40
codegen_flags: <defaults>
</compile_context>

<pallas_src>
import functools

import jax
import jax.numpy as jnp
from jax.experimental import pallas as pl
from jax.experimental.pallas import tpu as pltpu


# ----------------------------------------------------------------------------
# Pallas kernels
# ----------------------------------------------------------------------------
def _conv3x3_kernel(x_ref, w_ref, biasb_ref, o_ref, *, Wp):
    """3x3 same-padding conv for one image / one Cout tile, merged-K matmul.

    x_ref:  (1, H*Wp + 2*(Wp+1), Cin) bf16  width-padded, flattened, flat halo
    w_ref:  (9*Cin, TN)               bf16  tap-major packed weights
    o_ref:  (1, H*Wp, TN)             bf16  (valid columns sliced by wrapper)

    Tap (kh, kw) of output flat position i reads x at flat offset
    i + (kh-1)*Wp + (kw-1); the flat halo (Wp+1 zeros each side) supplies the
    top/bottom zero padding, the width pad supplies left/right.  The 9 shifted
    views are concatenated along channels -> one deep-K MXU matmul, and the
    output tile is written exactly once with biasb folded in.
    """
    HWf = o_ref.shape[1]
    halo = Wp + 1
    taps = []
    for kh in range(3):
        for kw in range(3):
            off = (kh - 1) * Wp + (kw - 1) + halo          # static, >= 0
            taps.append(x_ref[0, off:off + HWf, :])
    patch = jnp.concatenate(taps, axis=-1)                 # (HWf, 9*Cin) bf16
    acc = jnp.dot(patch, w_ref[...], preferred_element_type=jnp.float32)
    o_ref[0] = (acc + biasb_ref[0]).astype(o_ref.dtype)    # single store


def _relu_affine_kernel(x_ref, scale_ref, bias_ref, o_ref):
    """relu(x*scale + bias) — identity folded into scale by the wrapper."""
    o_ref[...] = jnp.maximum(x_ref[...] * scale_ref[0] + bias_ref[0], 0.0)


def _relu_affine_residual_kernel(x_ref, res_ref, scale_ref, bias_ref, o_ref):
    """relu(x*scale + bias + res) — only used when downsample is present."""
    o_ref[...] = jnp.maximum(
        x_ref[...] * scale_ref[0] + bias_ref[0] + res_ref[...], 0.0)


# ----------------------------------------------------------------------------
# Wrappers
# ----------------------------------------------------------------------------
def pack_conv3x3_weight(w, cin_pad, cout_pad):
    """(Cout, Cin, 3, 3) f32 -> (9*cin_pad, cout_pad) bf16, tap-major rows.

    Row index = (kh*3 + kw)*cin_pad + ci, matching the kernel's tap concat
    order.  Padded input/output channels carry zero weights.
    """
    cout, cin, _, _ = w.shape
    wp = jnp.transpose(w, (2, 3, 1, 0))                        # (3,3,Cin,Cout)
    wp = jnp.pad(wp, ((0, 0), (0, 0), (0, cin_pad - cin), (0, cout_pad - cout)))
    return wp.reshape(9 * cin_pad, cout_pad).astype(jnp.bfloat16)


def conv3x3_pallas(x_nhwc, w_packed, biasa, biasb, stride=1):
    """Dense 3x3 conv (rho=0 => blocksparse layout fully dense), padding=1.

    x_nhwc:   (N, H, W, Cin) float  (Cin may already include zero-padded chans)
    w_packed: (9*Cin, Cout_pad) bf16 from pack_conv3x3_weight (Cout_pad%128==0)
    Returns (N, Hout, Wout, Cout_pad) bf16.

    biasa is applied to the interior before zero padding (reference semantics:
    conv(pad(x + biasa)) + biasb).
    """
    N, H, W, Cin = x_nhwc.shape
    KCin, cout_pad = w_packed.shape
    assert KCin == 9 * Cin and cout_pad % 128 == 0
    # Wider Cout tile fills the 256x256 MXU on v6e/v7x; 128 is v5e-native and
    # still fine everywhere.
    TN = 256 if cout_pad % 256 == 0 else 128
    Wp = W + 2
    HWf = H * Wp
    halo = Wp + 1

    # biasa on the interior, then width halo + flat halo (all zeros), bf16.
    xb = (x_nhwc.astype(jnp.float32) + biasa).astype(jnp.bfloat16)
    xb = jnp.pad(xb, ((0, 0), (0, 0), (1, 1), (0, 0)))          # (N,H,Wp,Cin)
    xf = xb.reshape(N, HWf, Cin)
    xf = jnp.pad(xf, ((0, 0), (halo, halo), (0, 0)))            # flat halo

    kernel = functools.partial(_conv3x3_kernel, Wp=Wp)
    out = pl.pallas_call(
        kernel,
        out_shape=jax.ShapeDtypeStruct((N, HWf, cout_pad), jnp.bfloat16),
        grid_spec=pltpu.PrefetchScalarGridSpec(
            num_scalar_prefetch=0,
            grid=(N, cout_pad // TN),
            in_specs=[
                # Whole (width-padded, flattened) image per grid step; x block
                # index is constant across the Cout axis so it is fetched once
                # per image.  TODO(synk): very large spatial extents (e.g.
                # 112x112 on v7x's 64 MiB VMEM) want an extra H-tiled grid
                # axis with a 1-row halo.
                pl.BlockSpec((1, HWf + 2 * halo, Cin), lambda n, j: (n, 0, 0)),
                pl.BlockSpec((9 * Cin, TN), lambda n, j: (0, j)),
                pl.BlockSpec(memory_space=pltpu.MemorySpace.SMEM),   # biasb
            ],
            out_specs=pl.BlockSpec((1, HWf, TN), lambda n, j: (n, 0, j)),
        ),
        compiler_params=pltpu.CompilerParams(
            dimension_semantics=("parallel", "parallel"),
            vmem_limit_bytes=32 * 1024 * 1024,
        ),
        cost_estimate=pl.CostEstimate(
            flops=2 * N * HWf * 9 * Cin * cout_pad,
            transcendentals=0,
            bytes_accessed=(N * (HWf + 2 * halo) * Cin * 2
                            + 9 * Cin * cout_pad * 2
                            + N * HWf * cout_pad * 2),
        ),
    )(
        xf,
        w_packed,
        jnp.reshape(jnp.asarray(biasb, jnp.float32), (1,)),
    )

    out = out.reshape(N, H, Wp, cout_pad)[:, :, 1:W + 1, :]     # drop garbage cols
    if stride > 1:
        # TODO(synk): stride>1 is computed at stride 1 and subsampled
        # (mathematically identical for a 3x3/pad-1 conv; wastes FLOPs on a
        # branch whose result the reference forward discards anyway).
        out = out[:, ::stride, ::stride, :]
    return out


def _flatten_lane_dense(x):
    """Flatten to (rows, lane) with lane a multiple of 128 (padding if needed)."""
    total = x.size
    lane = None
    for l in (2048, 1024, 512, 256, 128):
        if total % l == 0:
            lane = l
            break
    if lane is None:
        pad = (-total) % 128
        lane = 128
        flat = jnp.pad(x.reshape(-1), (0, pad))
    else:
        pad = 0
        flat = x.reshape(-1)
    return flat.reshape(flat.size // lane, lane), pad


def fused_relu_pallas(x, scale, bias, residual=None):
    """relu(x*scale + bias [+ residual]) on wide lane-dense tiles.

    When the residual is the input itself the caller folds it into `scale`
    and passes residual=None, so x is read from HBM exactly once.
    """
    orig_shape = x.shape
    x2, pad = _flatten_lane_dense(x.astype(jnp.float32))
    rows, lane = x2.shape
    block_rows = rows
    if rows > 1024:
        for b in (1024, 512, 256, 128, 64, 32, 16, 8):
            if rows % b == 0:
                block_rows = b
                break

    scale_a = jnp.reshape(jnp.asarray(scale, jnp.float32), (1,))
    bias_a = jnp.reshape(jnp.asarray(bias, jnp.float32), (1,))
    tile_spec = pl.BlockSpec((block_rows, lane), lambda i: (i, 0))
    smem_spec = pl.BlockSpec(memory_space=pltpu.MemorySpace.SMEM)

    if residual is None:
        kernel = _relu_affine_kernel
        in_specs = [tile_spec, smem_spec, smem_spec]
        args = (x2, scale_a, bias_a)
    else:
        r2, _ = _flatten_lane_dense(residual.astype(jnp.float32))
        kernel = _relu_affine_residual_kernel
        in_specs = [tile_spec, tile_spec, smem_spec, smem_spec]
        args = (x2, r2, scale_a, bias_a)

    out = pl.pallas_call(
        kernel,
        out_shape=jax.ShapeDtypeStruct((rows, lane), jnp.float32),
        grid_spec=pltpu.PrefetchScalarGridSpec(
            num_scalar_prefetch=0,
            grid=(rows // block_rows,),
            in_specs=in_specs,
            out_specs=pl.BlockSpec((block_rows, lane), lambda i: (i, 0)),
        ),
        compiler_params=pltpu.CompilerParams(
            dimension_semantics=("parallel",),
            vmem_limit_bytes=32 * 1024 * 1024,
        ),
    )(*args)

    out = out.reshape(-1)
    if pad:
        out = out[:x.size]
    return out.reshape(orig_shape)


# ----------------------------------------------------------------------------
# Parameters & forward
# ----------------------------------------------------------------------------
def init_fixup_block_params(key, inplanes, planes):
    """Deterministic parameter init matching FixupBasicBlock.__init__ shapes."""
    k1, k2 = jax.random.split(key)
    scale1 = (9.0 * inplanes) ** -0.5
    scale2 = (9.0 * planes) ** -0.5
    return {
        "bias1b": jnp.zeros((1,), jnp.float32),
        "w1": jax.random.normal(k1, (planes, inplanes, 3, 3), jnp.float32) * scale1,
        "bias2a": jnp.zeros((1,), jnp.float32),
        "bias2b": jnp.zeros((1,), jnp.float32),
        "w2": jax.random.normal(k2, (planes, planes, 3, 3), jnp.float32) * scale2,
        "rscale": jnp.ones((1,), jnp.float32),
        "rbias": jnp.zeros((1,), jnp.float32),
    }


def prepare_fixup_block_params(params, inplanes, planes):
    """One-time weight packing (hoisted out of the forward pass)."""
    cpad = max(128, ((planes + 127) // 128) * 128)   # lane-dense Cout padding
    return {
        "planes": planes,
        "bias1b": params["bias1b"],
        "bias2a": params["bias2a"],
        "bias2b": params["bias2b"],
        "rscale": params["rscale"],
        "rbias": params["rbias"],
        "w1p": pack_conv3x3_weight(params["w1"], inplanes, cpad),
        "w2p": pack_conv3x3_weight(params["w2"], cpad, cpad),
    }


def fixup_basic_block_forward(x, prepared, stride=1, downsample=None):
    """Re-implementation of FixupBasicBlock.forward (NCHW in / NCHW out).

    Returns (result, conv_out).  `result` matches the reference return value;
    `conv_out` is the conv1->conv2 chain (computed but not consumed by the
    reference return) so the conv pallas_calls are not dead code.
    """
    planes = prepared["planes"]

    # Channels-last once at the block boundary; conv1 -> conv2 stays NHWC/bf16.
    x_nhwc = jnp.transpose(x, (0, 2, 3, 1))
    out1 = conv3x3_pallas(x_nhwc, prepared["w1p"], 0.0, prepared["bias1b"],
                          stride=stride)
    out2 = conv3x3_pallas(out1, prepared["w2p"], prepared["bias2a"],
                          prepared["bias2b"], stride=1)
    conv_out = jnp.transpose(out2[..., :planes], (0, 3, 1, 2))  # bf16, dead branch

    if downsample is None:
        # identity IS x -> fold: relu(x*(rscale+1) + rbias), single input.
        result = fused_relu_pallas(x, prepared["rscale"] + 1.0, prepared["rbias"])
    else:
        # TODO(synk): downsample path (blocksparse 1x1 conv with biasb=bias1a)
        # is constructed externally in the reference; use the 2-input kernel.
        identity = downsample(x)
        result = fused_relu_pallas(x, prepared["rscale"], prepared["rbias"],
                                   residual=identity)
    return result, conv_out


if __name__ == "__main__":
    key = jax.random.PRNGKey(0)
    N, C, H, W = 2, 4, 16, 16            # inplanes = planes = 4, stride = 1
    kx, kp = jax.random.split(key)
    x = jax.random.normal(kx, (N, C, H, W), jnp.float32)
    params = init_fixup_block_params(kp, inplanes=C, planes=C)
    prepared = prepare_fixup_block_params(params, inplanes=C, planes=C)  # once

    result, conv_out = fixup_basic_block_forward(x, prepared, stride=1)
    jax.block_until_ready(result)
    jax.block_until_ready(conv_out)

    # --- sanity: returned value (f32 path) ----------------------------------
    ref_out = jnp.maximum(x * params["rscale"][0] + params["rbias"][0] + x, 0.0)
    assert jnp.allclose(result, ref_out, atol=1e-5), "relu path mismatch"

    # --- sanity: conv branch (bf16 matmul, f32 accumulation) -----------------
    def conv_ref(xin_nhwc, w, biasa, biasb, stride):
        w_hwio = jnp.transpose(w, (2, 3, 1, 0))
        y = jax.lax.conv_general_dilated(
            xin_nhwc + biasa, w_hwio, (stride, stride), ((1, 1), (1, 1)),
            dimension_numbers=("NHWC", "HWIO", "NHWC"))
        return y + biasb

    x_nhwc = jnp.transpose(x, (0, 2, 3, 1))
    r1 = conv_ref(x_nhwc, params["w1"], 0.0, params["bias1b"][0], 1)
    r2 = conv_ref(r1, params["w2"], params["bias2a"][0], params["bias2b"][0], 1)
    ref_conv = jnp.transpose(r2, (0, 3, 1, 2))
    err = float(jnp.max(jnp.abs(conv_out.astype(jnp.float32) - ref_conv)))
    assert err < 7.5e-2, f"conv path mismatch: max abs err {err}"

    assert result.shape == (N, C, H, W)
    assert conv_out.shape == (N, C, H, W)
    print("KERNEL_OK")
</pallas_src>

<mosaic_0001>
module attributes {stable_mosaic.version = 11 : i64} {
  func.func @_conv3x3_kernel(%arg0: i32, %arg1: i32, %arg2: memref<1x326x4xbf16, #tpu.memory_space<vmem>>, %arg3: memref<36x128xbf16, #tpu.memory_space<vmem>>, %arg4: memref<1xf32, #tpu.memory_space<smem>>, %arg5: memref<1x288x128xbf16, #tpu.memory_space<vmem>>) attributes {dimension_semantics = [#tpu.dimension_semantics<parallel>, #tpu.dimension_semantics<parallel>], iteration_bounds = array<i64: 2, 1>, scalar_prefetch = 0 : i64, scratch_operands = 0 : i64, tpu.core_type = #tpu.core_type<tc>, window_params = [{transform_indices = @transform_0, window_bounds = array<i64: 1, 326, 4>}, {transform_indices = @transform_1, window_bounds = array<i64: 36, 128>}, {transform_indices = @transform_2, window_bounds = array<i64: 1>}, {transform_indices = @transform_3, window_bounds = array<i64: 1, 288, 128>}]} {
    %c0 = arith.constant 0 : index
    %c0_0 = arith.constant 0 : index
    %c0_1 = arith.constant 0 : index
    %0 = vector.load %arg2[%c0, %c0_0, %c0_1] : memref<1x326x4xbf16, #tpu.memory_space<vmem>>, vector<1x288x4xbf16>
    %1 = vector.shape_cast %0 : vector<1x288x4xbf16> to vector<288x4xbf16>
    %c0_2 = arith.constant 0 : index
    %c1 = arith.constant 1 : index
    %c0_3 = arith.constant 0 : index
    %2 = vector.load %arg2[%c0_2, %c1, %c0_3] : memref<1x326x4xbf16, #tpu.memory_space<vmem>>, vector<1x288x4xbf16>
    %3 = vector.shape_cast %2 : vector<1x288x4xbf16> to vector<288x4xbf16>
    %c0_4 = arith.constant 0 : index
    %c2 = arith.constant 2 : index
    %c0_5 = arith.constant 0 : index
    %4 = vector.load %arg2[%c0_4, %c2, %c0_5] : memref<1x326x4xbf16, #tpu.memory_space<vmem>>, vector<1x288x4xbf16>
    %5 = vector.shape_cast %4 : vector<1x288x4xbf16> to vector<288x4xbf16>
    %c0_6 = arith.constant 0 : index
    %c18 = arith.constant 18 : index
    %c0_7 = arith.constant 0 : index
    %6 = vector.load %arg2[%c0_6, %c18, %c0_7] : memref<1x326x4xbf16, #tpu.memory_space<vmem>>, vector<1x288x4xbf16>
    %7 = vector.shape_cast %6 : vector<1x288x4xbf16> to vector<288x4xbf16>
    %c0_8 = arith.constant 0 : index
    %c19 = arith.constant 19 : index
    %c0_9 = arith.constant 0 : index
    %8 = vector.load %arg2[%c0_8, %c19, %c0_9] : memref<1x326x4xbf16, #tpu.memory_space<vmem>>, vector<1x288x4xbf16>
    %9 = vector.shape_cast %8 : vector<1x288x4xbf16> to vector<288x4xbf16>
    %c0_10 = arith.constant 0 : index
    %c20 = arith.constant 20 : index
    %c0_11 = arith.constant 0 : index
    %10 = vector.load %arg2[%c0_10, %c20, %c0_11] : memref<1x326x4xbf16, #tpu.memory_space<vmem>>, vector<1x288x4xbf16>
    %11 = vector.shape_cast %10 : vector<1x288x4xbf16> to vector<288x4xbf16>
    %c0_12 = arith.constant 0 : index
    %c36 = arith.constant 36 : index
    %c0_13 = arith.constant 0 : index
    %12 = vector.load %arg2[%c0_12, %c36, %c0_13] : memref<1x326x4xbf16, #tpu.memory_space<vmem>>, vector<1x288x4xbf16>
    %13 = vector.shape_cast %12 : vector<1x288x4xbf16> to vector<288x4xbf16>
    %c0_14 = arith.constant 0 : index
    %c37 = arith.constant 37 : index
    %c0_15 = arith.constant 0 : index
    %14 = vector.load %arg2[%c0_14, %c37, %c0_15] : memref<1x326x4xbf16, #tpu.memory_space<vmem>>, vector<1x288x4xbf16>
    %15 = vector.shape_cast %14 : vector<1x288x4xbf16> to vector<288x4xbf16>
    %c0_16 = arith.constant 0 : index
    %c38 = arith.constant 38 : index
    %c0_17 = arith.constant 0 : index
    %16 = vector.load %arg2[%c0_16, %c38, %c0_17] : memref<1x326x4xbf16, #tpu.memory_space<vmem>>, vector<1x288x4xbf16>
    %17 = vector.shape_cast %16 : vector<1x288x4xbf16> to vector<288x4xbf16>
    %18 = tpu.concatenate %1, %3, %5, %7, %9, %11, %13, %15, %17 in 1 : vector<288x4xbf16>, vector<288x4xbf16>, vector<288x4xbf16>, vector<288x4xbf16>, vector<288x4xbf16>, vector<288x4xbf16>, vector<288x4xbf16>, vector<288x4xbf16>, vector<288x4xbf16> -> vector<288x36xbf16>
    %c0_18 = arith.constant 0 : index
    %c0_19 = arith.constant 0 : index
    %19 = vector.load %arg3[%c0_18, %c0_19] : memref<36x128xbf16, #tpu.memory_space<vmem>>, vector<36x128xbf16>
    %cst = arith.constant dense<0.000000e+00> : vector<288x128xf32>
    %20 = tpu.matmul %18, %19, %cst {dimension_numbers = #tpu.dot_dimension_numbers<[1], [0], [0], [1], [0, 0, 1, 1], [], []>} : vector<288x36xbf16>, vector<36x128xbf16>, vector<288x128xf32> -> vector<288x128xf32>
    %c0_20 = arith.constant 0 : index
    %21 = memref.load %arg4[%c0_20] : memref<1xf32, #tpu.memory_space<smem>>
    %22 = vector.broadcast %21 : f32 to vector<288x128xf32>
    %23 = arith.addf %20, %22 : vector<288x128xf32>
    %24 = arith.truncf %23 : vector<288x128xf32> to vector<288x128xbf16>
    %c0_21 = arith.constant 0 : index
    %c0_22 = arith.constant 0 : index
    %c0_23 = arith.constant 0 : index
    %25 = vector.load %arg5[%c0_21, %c0_22, %c0_23] : memref<1x288x128xbf16, #tpu.memory_space<vmem>>, vector<1x288x128xbf16>
    %26 = vector.shape_cast %25 : vector<1x288x128xbf16> to vector<288x128xbf16>
    %27 = vector.shape_cast %24 : vector<288x128xbf16> to vector<1x288x128xbf16>
    tpu.vector_store %arg5[%c0_21, %c0_22, %c0_23], %27 {strides = array<i32>} : memref<1x288x128xbf16, #tpu.memory_space<vmem>>, vector<1x288x128xbf16>,
    return
  }
  func.func @transform_0(%arg0: i32, %arg1: i32) -> (i32, i32, i32) {
    %c0_i32 = arith.constant 0 : i32
    %c0_i32_0 = arith.constant 0 : i32
    %c0_i32_1 = arith.constant 0 : i32
    return %arg0, %c0_i32, %c0_i32_0 : i32, i32, i32
  }
  func.func @transform_1(%arg0: i32, %arg1: i32) -> (i32, i32) {
    %c0_i32 = arith.constant 0 : i32
    %c0_i32_0 = arith.constant 0 : i32
    return %c0_i32, %arg1 : i32, i32
  }
  func.func @transform_2(%arg0: i32, %arg1: i32) -> i32 {
    %c0_i32 = arith.constant 0 : i32
    %c0_i32_0 = arith.constant 0 : i32
    return %c0_i32 : i32
  }
  func.func @transform_3(%arg0: i32, %arg1: i32) -> (i32, i32, i32) {
    %c0_i32 = arith.constant 0 : i32
    %c0_i32_0 = arith.constant 0 : i32
    return %arg0, %c0_i32, %arg1 : i32, i32, i32
  }
}

</mosaic_0001>

<llo_original>
// kernel: tpu_custom_call.1
$region0: #{tpu_custom_call.1}
  #allocation0 [shape = 'u32[]', space=smem, size = 0x4, offset = 0x4, fixed_abs, tag = 'smem constant byte address 0x4 - core index']
  #allocation1 [shape = 'u32[144,128]{1,0:T(1,128)}', space=vmem, size = 0x12000, scoped, tag = 'internal scratch']
  #allocation2 [shape = 'f32[1]{0:T(128)S(6)}', space=smem, size = 0x200, scoped, tag = 'scoped memory for tpu_custom_call.1']
  %s0 = inlined_call_operand.vmem [shape: bf16[2,326,4], index: 0, kind: input, shape index: {}]
  %s1 = inlined_call_operand.vmem [shape: bf16[36,128], index: 1, kind: input, shape index: {}]
  %s2 = inlined_call_operand.<no memory space> [shape: f32[1], index: 2, kind: input, shape index: {}]
  %s3 = inlined_call_operand.hbm [shape: bf16[2,288,128], index: 3, kind: output, shape index: {}]
  %s4 = sld [smem:[#allocation0]]
  $region45: #{tpu_custom_call.1} parent=0
    _
  %s6 = ssub.s32 1, %s4
  %s7 = scalar_select 0, %s6, %s4
  %8 = sst [smem:[#allocation2]] %s2
  $region1: #{tpu_custom_call.1} parent=0
    #allocation3 [shape = 'u8[147456]{0}', space=vmem, size = 0x24000, scoped, tag = 'output window, operand 0']
    #allocation4 [shape = 's32[2]{0}', space=sflag, size = 0x8, scoped, tag = 'scoped memory for tpu_custom_call.1']
    %9 = vsyncpa [#allocation4], 0
    %s10 = scalar_lea.sflag [#allocation4], 1
    %11 = vsyncpa %s10, 0
    loop: start=0, step=1, limit=4
    $region2: #{tpu_custom_call.1} parent=1 // loop_pre_header
      _
    $region3: #{tpu_custom_call.1} parent=1 // loop_header
      %s13 = sphi 0, %s17
      %p14 = scmp.ge.s32.totalorder %s13, 4
      %s20 = sphi 0, %s32
      %s21 = sphi 0, %s28
      %s22 = sphi 0, %s20
      %s23 = sphi 0, %s21
      %s24 = sphi 0, %s22
      %s25 = sphi 0, %s23
      %s35 = sphi 0, %s37
      %s38 = sphi 0, %s35
      %s39 = sphi 0, %s38
      %s55 = sphi 0, %s39
      %s61 = sphi 0, %s63
      %s64 = sphi 0, %s61
      %s65 = sphi 0, %s64
      %s81 = sphi 0, %s65
      %s85 = sphi 0, %s85
      %s87 = sphi 0, %s85
      %s88 = sphi 0, %s87
      %s102 = sphi 0, %s88
      %s110 = sphi 0, %s112
      %s113 = sphi 0, %s110
      %s114 = sphi 0, %s113
      %s130 = sphi 0, %s114
    $region4: #{tpu_custom_call.1} parent=1 // loop_header_branch
      %16 = sbr.rel (%p14) target = $region8
    $region5: #{tpu_custom_call.1} parent=1 // loop_body
      %s18 = ssub.s32 %s13, 1
      %s19 = ssub.s32 %s13, 2
      %s26 = sadd.s32 1, %s21
      %p27 = scmp.ge.s32.totalorder %s26, 1
      %s28 = scalar_select %p27, 0, %s26
      %s29 = sadd.s32 1, %s20
      %s30 = scalar_select %p27, %s29, %s20
      %p31 = scmp.ge.s32.totalorder %s30, 2
      %s32 = scalar_select %p31, 0, %s30
      %s33 = ssub.s32 %s20, %s32
      %p34 = scmp.eq.s32.totalorder %s33, 0
      %s36 = sadd.s32 %s35, 1
      %s37 = scalar_select %p34, %s35, %s36
      %p40 = pneg %p34
      %p41 = scmp.eq.s32.totalorder %s13, 1
      %p42 = por %p40, %p41
      %p43 = scmp.ne.s32.totalorder %s35, %s38
      %p44 = scmp.eq.s32.totalorder %s13, 0
      %p45 = por %p43, %p44
      %p46 = scmp.ne.s32.totalorder %s35, %s38
      %p47 = scmp.eq.s32.totalorder %s18, 1
      %p48 = por %p46, %p47
      %p49 = scmp.ne.s32.totalorder %s38, %s39
      %p50 = scmp.eq.s32.totalorder %s18, 0
      %p51 = por %p49, %p50
      %p52 = scmp.ne.s32.totalorder %s38, %s39
      %p53 = scmp.eq.s32.totalorder %s19, 1
      %p54 = por %p52, %p53
      %p56 = scmp.ne.s32.totalorder %s39, %s55
      %p57 = scmp.eq.s32.totalorder %s19, 0
      %p58 = por %p56, %p57
      %s59 = ssub.s32 %s21, %s28
      %p60 = scmp.eq.s32.totalorder %s59, 0
      %s62 = sadd.s32 %s61, 1
      %s63 = scalar_select %p60, %s61, %s62
      %p66 = pneg %p60
      %p67 = scmp.eq.s32.totalorder %s13, 1
      %p68 = por %p66, %p67
      %p69 = scmp.ne.s32.totalorder %s61, %s64
      %p70 = scmp.eq.s32.totalorder %s13, 0
      %p71 = por %p69, %p70
      %p72 = scmp.ne.s32.totalorder %s61, %s64
      %p73 = scmp.eq.s32.totalorder %s18, 1
      %p74 = por %p72, %p73
      %p75 = scmp.ne.s32.totalorder %s64, %s65
      %p76 = scmp.eq.s32.totalorder %s18, 0
      %p77 = por %p75, %p76
      %p78 = scmp.ne.s32.totalorder %s64, %s65
      %p79 = scmp.eq.s32.totalorder %s19, 1
      %p80 = por %p78, %p79
      %p82 = scmp.ne.s32.totalorder %s65, %s81
      %p83 = scmp.eq.s32.totalorder %s19, 0
      %p84 = por %p82, %p83
      %s86 = sadd.s32 %s85, 1
      %p89 = scmp.eq.s32.totalorder %s13, 1
      %p90 = scmp.ne.s32.totalorder %s85, %s87
      %p91 = scmp.eq.s32.totalorder %s13, 0
      %p92 = por %p90, %p91
      %p93 = scmp.ne.s32.totalorder %s85, %s87
      %p94 = scmp.eq.s32.totalorder %s18, 1
      %p95 = por %p93, %p94
      %p96 = scmp.ne.s32.totalorder %s87, %s88
      %p97 = scmp.eq.s32.totalorder %s18, 0
      %p98 = por %p96, %p97
      %p99 = scmp.ne.s32.totalorder %s87, %s88
      %p100 = scmp.eq.s32.totalorder %s19, 1
      %p101 = por %p99, %p100
      %p103 = scmp.ne.s32.totalorder %s88, %s102
      %p104 = scmp.eq.s32.totalorder %s19, 0
      %p105 = por %p103, %p104
      %s106 = ssub.s32 %s20, %s32
      %s107 = ssub.s32 %s21, %s28
      %s108 = sor.u32 %s106, %s107
      %p109 = scmp.eq.s32.totalorder %s108, 0
      %s111 = sadd.s32 %s110, 1
      %s112 = scalar_select %p109, %s110, %s111
      %p115 = pneg %p109
      %p116 = scmp.eq.s32.totalorder %s13, 1
      %p117 = por %p115, %p116
      %p118 = scmp.ne.s32.totalorder %s110, %s113
      %p119 = scmp.eq.s32.totalorder %s13, 0
      %p120 = por %p118, %p119
      %p121 = scmp.ne.s32.totalorder %s110, %s113
      %p122 = scmp.eq.s32.totalorder %s18, 1
      %p123 = por %p121, %p122
      %p124 = scmp.ne.s32.totalorder %s113, %s114
      %p125 = scmp.eq.s32.totalorder %s18, 0
      %p126 = por %p124, %p125
      %p127 = scmp.ne.s32.totalorder %s113, %s114
      %p128 = scmp.eq.s32.totalorder %s19, 1
      %p129 = por %p127, %p128
      %p131 = scmp.ne.s32.totalorder %s114, %s130
      %p132 = scmp.eq.s32.totalorder %s19, 0
      %p133 = por %p131, %p132
      %p134 = scmp.le.s32.totalorder 1, %s13
      %p135 = scmp.lt.s32.totalorder %s13, 3
      %p136 = pnand %p134, %p135
      %p137 = pneg %p136
      // Predicated region
      $region9: #{tpu_custom_call.1} parent=5 // pred_check
        _
      $region10: #{tpu_custom_call.1} parent=5 // pred_check_branch
        %139 = sbr.rel (%p136) target = $region12
      $region11: #{tpu_custom_call.1} parent=5 // pred_region
        %s140 = ssub.s32 %s13, 1
        // Predicated region
        $region13: #{tpu_custom_call.1} parent=11 // pred_check
          %p141 = pneg %p77
        $region14: #{tpu_custom_call.1} parent=11 // pred_check_branch
          %143 = sbr.rel (%p141) target = $region16
        $region15: #{tpu_custom_call.1} parent=11 // pred_region
          %p144 = scmp.lt.s32.totalorder %s23, 0
          %s145 = scalar_select %p144, %s23, 0
          %s146 = smul.addr %s145, 4
          %s147 = scalar_lea.vmem %s1, %s146
        $region16: #{tpu_custom_call.1} parent=11 // pred_fallthru
          _
        // Predicated region
        $region17: #{tpu_custom_call.1} parent=11 // pred_check
          %p148 = pneg %p98
        $region18: #{tpu_custom_call.1} parent=11 // pred_check_branch
          %150 = sbr.rel (%p148) target = $region20
        $region19: #{tpu_custom_call.1} parent=11 // pred_region
          _
        $region20: #{tpu_custom_call.1} parent=11 // pred_fallthru
          _
      $region12: #{tpu_custom_call.1} parent=5 // pred_fallthru
        _
      %p151 = scmp.lt.s32.totalorder %s13, 2
      // Predicated region
      $region21: #{tpu_custom_call.1} parent=5 // pred_check
        %p152 = pneg %p151
      $region22: #{tpu_custom_call.1} parent=5 // pred_check_branch
        %154 = sbr.rel (%p152) target = $region24
      $region23: #{tpu_custom_call.1} parent=5 // pred_region
        // Predicated region
        $region25: #{tpu_custom_call.1} parent=23 // pred_check
          %p155 = pneg %p45
        $region26: #{tpu_custom_call.1} parent=23 // pred_check_branch
          %157 = sbr.rel (%p155) target = $region28
        $region27: #{tpu_custom_call.1} parent=23 // pred_region
          %p158 = scmp.lt.s32.totalorder %s20, 1
          %s159 = scalar_select %p158, %s20, 1
          %s160 = smul.addr %s159, 41
          %s161 = smul.addr %s160, 4
          %s162 = scalar_lea.vmem %s0, %s161
        $region28: #{tpu_custom_call.1} parent=23 // pred_fallthru
          _
      $region24: #{tpu_custom_call.1} parent=5 // pred_fallthru
        _
      %p163 = scmp.le.s32.totalorder 1, %s13
      %p164 = scmp.lt.s32.totalorder %s13, 3
      %p165 = pnand %p163, %p164
      %p166 = pneg %p165
      // Predicated region
      $region29: #{tpu_custom_call.1} parent=5 // pred_check
        _
      $region30: #{tpu_custom_call.1} parent=5 // pred_check_branch
        %168 = sbr.rel (%p165) target = $region32
      $region31: #{tpu_custom_call.1} parent=5 // pred_region
        %s169 = ssub.s32 %s13, 1
        %p170 = scmp.lt.s32.totalorder %s22, 1
        %s171 = scalar_select %p170, %s22, 1
        %s172 = smul.addr %s171, 41
        %s173 = smul.addr %s172, 4
        %s174 = scalar_lea.vmem %s0, %s173
        %p175 = pneg %p51
        %p176 = pneg %p48
        %p177 = scmp.lt.s32.totalorder %s23, 0
        %s178 = scalar_select %p177, %s23, 0
        %s179 = smul.addr %s178, 4
        %s180 = scalar_lea.vmem %s1, %s179
        %p181 = pneg %p77
        %p182 = pneg %p74
        %p183 = pneg %p98
        %p184 = pneg %p95
        %p185 = pneg %p126
        %p186 = pneg %p123
        %s187 = sand.u32 %s113, 1
        %s188 = scalar_lea.sflag [#allocation4], %s187
        %s189 = sand.u32 %s113, 1
        %s190 = smul.addr %s189, 144
        %s191 = scalar_lea.vmem [#allocation3], %s190
        %p192 = scmp.lt.s32.totalorder %s22, 1
        %s193 = scalar_select %p192, %s22, 1
        %s194 = smul.addr %s193, 41
        %s195 = smul.addr %s194, 4
        %s196 = scalar_lea.vmem %s0, %s195
        %p197 = scmp.lt.s32.totalorder %s23, 0
        %s198 = scalar_select %p197, %s23, 0
        %s199 = smul.addr %s198, 4
        %s200 = scalar_lea.vmem %s1, %s199
        %v202 = vld [vmem:[%s196] sm:$0xf]
        %v203 = vld [vmem:[%s196 + $0x4] sm:$0xf]
        %v204 = vld [vmem:[%s196 + $0x8] sm:$0xf]
        %v205 = vld [vmem:[%s196 + $0xc] sm:$0xf]
        %v206 = vld [vmem:[%s196 + $0x10] sm:$0xf]
        %v207 = vld [vmem:[%s196 + $0x14] sm:$0xf]
        %v208 = vld [vmem:[%s196 + $0x18] sm:$0xf]
        %v209 = vld [vmem:[%s196 + $0x1c] sm:$0xf]
        %v210 = vld [vmem:[%s196 + $0x20] sm:$0xf]
        %v211 = vld [vmem:[%s196 + $0x24] sm:$0xf]
        %v212 = vld [vmem:[%s196 + $0x28] sm:$0xf]
        %v213 = vld [vmem:[%s196 + $0x2c] sm:$0xf]
        %v214 = vld [vmem:[%s196 + $0x30] sm:$0xf]
        %v215 = vld [vmem:[%s196 + $0x34] sm:$0xf]
        %v216 = vld [vmem:[%s196 + $0x38] sm:$0xf]
        %v217 = vld [vmem:[%s196 + $0x3c] sm:$0xf]
        %v218 = vld [vmem:[%s196 + $0x40] sm:$0xf]
        %v219 = vld [vmem:[%s196 + $0x44] sm:$0xf]
        %v220 = vld [vmem:[%s196 + $0x48] sm:$0xf]
        %v221 = vld [vmem:[%s196 + $0x4c] sm:$0xf]
        %v222 = vld [vmem:[%s196 + $0x50] sm:$0xf]
        %v223 = vld [vmem:[%s196 + $0x54] sm:$0xf]
        %v224 = vld [vmem:[%s196 + $0x58] sm:$0xf]
        %v225 = vld [vmem:[%s196 + $0x5c] sm:$0xf]
        %v226 = vld [vmem:[%s196 + $0x60] sm:$0xf]
        %v227 = vld [vmem:[%s196 + $0x64] sm:$0xf]
        %v228 = vld [vmem:[%s196 + $0x68] sm:$0xf]
        %v229 = vld [vmem:[%s196 + $0x6c] sm:$0xf]
        %v230 = vld [vmem:[%s196 + $0x70] sm:$0xf]
        %v231 = vld [vmem:[%s196 + $0x74] sm:$0xf]
        %v232 = vld [vmem:[%s196 + $0x78] sm:$0xf]
        %v233 = vld [vmem:[%s196 + $0x7c] sm:$0xf]
        %v234 = vld [vmem:[%s196 + $0x80] sm:$0xf]
        %v235 = vld [vmem:[%s196 + $0x84] sm:$0xf]
        %v236 = vld [vmem:[%s196 + $0x88] sm:$0xf]
        %v237 = vld [vmem:[%s196 + $0x8c] sm:$0xf]
        %v238 = vld [vmem:[%s196 + $0x90] sm:$0x1]
        %v239 = vld [vmem:[%s196] sm:$0xe]
        %v240 = vld [vmem:[%s196 + $0x8] sm:$0xe]
        %v241 = vld [vmem:[%s196 + $0x90] sm:$0xf]
        %v242 = vld [vmem:[%s196 + $0x94] sm:$0xf]
        %v243 = vld [vmem:[%s196 + $0x98] sm:$0x1]
        %v244 = vld [vmem:[%s196 + $0x98] sm:$0x3]
        %v245 = vld [vmem:[%s196 + $0x8] sm:$0xc]
        %v246 = vld [vmem:[%s196 + $0x10] sm:$0xc]
        %v247 = vld [vmem:[%s196 + $0x98] sm:$0xf]
        %v248 = vld [vmem:[%s196 + $0x9c] sm:$0xf]
        %v249 = vld [vmem:[%s196 + $0xa0] sm:$0x3]
        %v250 = vld [vmem:[%s196 + $0xa0] sm:$0x7]
        %v251 = vld [vmem:[%s196 + $0x10] sm:$0x8]
        %v288 = vunpack.c.l.b16 %v202
        %v289 = vunpack.c.l.b16 %v203
        %v290 = vunpack.c.l.b16 %v204
        %v291 = vunpack.c.l.b16 %v205
        %v292 = vunpack.c.l.b16 %v206
        %v293 = vunpack.c.l.b16 %v207
        %v294 = vunpack.c.l.b16 %v208
        %v295 = vunpack.c.l.b16 %v209
        %v296 = vunpack.c.l.b16 %v210
        %v297 = vunpack.c.l.b16 %v211
        %v298 = vunpack.c.l.b16 %v212
        %v299 = vunpack.c.l.b16 %v213
        %v300 = vunpack.c.l.b16 %v214
        %v301 = vunpack.c.l.b16 %v215
        %v302 = vunpack.c.l.b16 %v216
        %v303 = vunpack.c.l.b16 %v217
        %v304 = vunpack.c.l.b16 %v218
        %v305 = vunpack.c.l.b16 %v219
        %v306 = vunpack.c.l.b16 %v220
        %v307 = vunpack.c.l.b16 %v221
        %v308 = vunpack.c.l.b16 %v222
        %v309 = vunpack.c.l.b16 %v223
        %v310 = vunpack.c.l.b16 %v224
        %v311 = vunpack.c.l.b16 %v225
        %v312 = vunpack.c.l.b16 %v226
        %v313 = vunpack.c.l.b16 %v227
        %v314 = vunpack.c.l.b16 %v228
        %v315 = vunpack.c.l.b16 %v229
        %v316 = vunpack.c.l.b16 %v230
        %v317 = vunpack.c.l.b16 %v231
        %v318 = vunpack.c.l.b16 %v232
        %v319 = vunpack.c.l.b16 %v233
        %v320 = vunpack.c.l.b16 %v234
        %v321 = vunpack.c.l.b16 %v235
        %v322 = vunpack.c.l.b16 %v236
        %v323 = vunpack.c.l.b16 %v237
        %v324 = vpack.c.b16 %v289, %v288
        %v325 = vpack.c.b16 %v291, %v290
        %v326 = vpack.c.b16 %v293, %v292
        %v327 = vpack.c.b16 %v295, %v294
        %v328 = vpack.c.b16 %v297, %v296
        %v329 = vpack.c.b16 %v299, %v298
        %v330 = vpack.c.b16 %v301, %v300
        %v331 = vpack.c.b16 %v303, %v302
        %v332 = vpack.c.b16 %v305, %v304
        %v333 = vpack.c.b16 %v307, %v306
        %v334 = vpack.c.b16 %v309, %v308
        %v335 = vpack.c.b16 %v311, %v310
        %v336 = vpack.c.b16 %v313, %v312
        %v337 = vpack.c.b16 %v315, %v314
        %v338 = vpack.c.b16 %v317, %v316
        %v339 = vpack.c.b16 %v319, %v318
        %v340 = vpack.c.b16 %v321, %v320
        %v341 = vpack.c.b16 %v323, %v322
        %v343 = vunpack.c.l.b16 %v238
        %v344 = vpack.c.b16 %v343, %v343
        %vm345 = vsmask.f32 7424
        %v347 = vshrl.u32 %v324, 16
        %v349 = vshll.u32 %v324, 16
        %v351 = vrot.slane %v349, 1
        %v352 = vor.u32 %v347, %v351
        %v354 = vshll.u32 %v325, 16
        %v356 = vrot.slane %v354, 1
        %v357 = vsel %vm345, %v352, %v356
        %v358 = vshrl.u32 %v325, 16
        %v360 = vor.u32 %v358, %v356
        %v362 = vshll.u32 %v326, 16
        %v364 = vrot.slane %v362, 1
        %v365 = vsel %vm345, %v360, %v364
        %v366 = vshrl.u32 %v326, 16
        %v368 = vor.u32 %v366, %v364
        %v370 = vshll.u32 %v327, 16
        %v372 = vrot.slane %v370, 1
        %v373 = vsel %vm345, %v368, %v372
        %v374 = vshrl.u32 %v327, 16
        %v376 = vor.u32 %v374, %v372
        %v378 = vshll.u32 %v328, 16
        %v380 = vrot.slane %v378, 1
        %v381 = vsel %vm345, %v376, %v380
        %v382 = vshrl.u32 %v328, 16
        %v384 = vor.u32 %v382, %v380
        %v386 = vshll.u32 %v329, 16
        %v388 = vrot.slane %v386, 1
        %v389 = vsel %vm345, %v384, %v388
        %v390 = vshrl.u32 %v329, 16
        %v392 = vor.u32 %v390, %v388
        %v394 = vshll.u32 %v330, 16
        %v396 = vrot.slane %v394, 1
        %v397 = vsel %vm345, %v392, %v396
        %v398 = vshrl.u32 %v330, 16
        %v400 = vor.u32 %v398, %v396
        %v402 = vshll.u32 %v331, 16
        %v404 = vrot.slane %v402, 1
        %v405 = vsel %vm345, %v400, %v404
        %v406 = vshrl.u32 %v331, 16
        %v408 = vor.u32 %v406, %v404
        %v410 = vshll.u32 %v332, 16
        %v412 = vrot.slane %v410, 1
        %v413 = vsel %vm345, %v408, %v412
        %v414 = vshrl.u32 %v332, 16
        %v416 = vor.u32 %v414, %v412
        %v418 = vshll.u32 %v333, 16
        %v420 = vrot.slane %v418, 1
        %v421 = vsel %vm345, %v416, %v420
        %v422 = vshrl.u32 %v333, 16
        %v424 = vor.u32 %v422, %v420
        %v426 = vshll.u32 %v334, 16
        %v428 = vrot.slane %v426, 1
        %v429 = vsel %vm345, %v424, %v428
        %v430 = vshrl.u32 %v334, 16
        %v432 = vor.u32 %v430, %v428
        %v434 = vshll.u32 %v335, 16
        %v436 = vrot.slane %v434, 1
        %v437 = vsel %vm345, %v432, %v436
        %v438 = vshrl.u32 %v335, 16
        %v440 = vor.u32 %v438, %v436
        %v442 = vshll.u32 %v336, 16
        %v444 = vrot.slane %v442, 1
        %v445 = vsel %vm345, %v440, %v444
        %v446 = vshrl.u32 %v336, 16
        %v448 = vor.u32 %v446, %v444
        %v450 = vshll.u32 %v337, 16
        %v452 = vrot.slane %v450, 1
        %v453 = vsel %vm345, %v448, %v452
        %v454 = vshrl.u32 %v337, 16
        %v456 = vor.u32 %v454, %v452
        %v458 = vshll.u32 %v338, 16
        %v460 = vrot.slane %v458, 1
        %v461 = vsel %vm345, %v456, %v460
        %v462 = vshrl.u32 %v338, 16
        %v464 = vor.u32 %v462, %v460
        %v466 = vshll.u32 %v339, 16
        %v468 = vrot.slane %v466, 1
        %v469 = vsel %vm345, %v464, %v468
        %v470 = vshrl.u32 %v339, 16
        %v472 = vor.u32 %v470, %v468
        %v474 = vshll.u32 %v340, 16
        %v476 = vrot.slane %v474, 1
        %v477 = vsel %vm345, %v472, %v476
        %v478 = vshrl.u32 %v340, 16
        %v480 = vor.u32 %v478, %v476
        %v482 = vshll.u32 %v341, 16
        %v484 = vrot.slane %v482, 1
        %v485 = vsel %vm345, %v480, %v484
        %v486 = vshrl.u32 %v341, 16
        %v488 = vor.u32 %v486, %v484
        %v490 = vshll.u32 %v344, 16
        %v492 = vrot.slane %v490, 1
        %v493 = vsel %vm345, %v488, %v492
        %494 = vrot.lane.b32.xlu0 %v357, 4
        %v495 = vpop.permute.xlu0 %494
        %496 = vrot.lane.b32.xlu0 %v365, 4
        %v497 = vpop.permute.xlu0 %496
        %498 = vrot.lane.b32.xlu0 %v373, 4
        %v499 = vpop.permute.xlu0 %498
        %500 = vrot.lane.b32.xlu0 %v381, 4
        %v501 = vpop.permute.xlu0 %500
        %502 = vrot.lane.b32.xlu0 %v389, 4
        %v503 = vpop.permute.xlu0 %502
        %504 = vrot.lane.b32.xlu0 %v397, 4
        %v505 = vpop.permute.xlu0 %504
        %506 = vrot.lane.b32.xlu0 %v405, 4
        %v507 = vpop.permute.xlu0 %506
        %508 = vrot.lane.b32.xlu0 %v413, 4
        %v509 = vpop.permute.xlu0 %508
        %510 = vrot.lane.b32.xlu0 %v421, 4
        %v511 = vpop.permute.xlu0 %510
        %512 = vrot.lane.b32.xlu0 %v429, 4
        %v513 = vpop.permute.xlu0 %512
        %514 = vrot.lane.b32.xlu0 %v437, 4
        %v515 = vpop.permute.xlu0 %514
        %516 = vrot.lane.b32.xlu0 %v445, 4
        %v517 = vpop.permute.xlu0 %516
        %518 = vrot.lane.b32.xlu0 %v453, 4
        %v519 = vpop.permute.xlu0 %518
        %520 = vrot.lane.b32.xlu0 %v461, 4
        %v521 = vpop.permute.xlu0 %520
        %522 = vrot.lane.b32.xlu0 %v469, 4
        %v523 = vpop.permute.xlu0 %522
        %524 = vrot.lane.b32.xlu0 %v477, 4
        %v525 = vpop.permute.xlu0 %524
        %526 = vrot.lane.b32.xlu0 %v485, 4
        %v527 = vpop.permute.xlu0 %526
        %528 = vrot.lane.b32.xlu0 %v493, 4
        %v529 = vpop.permute.xlu0 %528
        %v531 = vunpack.c.l.b16 %v239
        %v532 = vpack.c.b16 %v289, %v531
        %vm533 = vcmask 1046528
        %v534 = vrot.slane %v532, 1
        %v535 = vrot.slane %v325, 1
        %v536 = vsel %vm533, %v534, %v535
        %v537 = vrot.slane %v326, 1
        %v538 = vsel %vm533, %v535, %v537
        %v539 = vrot.slane %v327, 1
        %v540 = vsel %vm533, %v537, %v539
        %v541 = vrot.slane %v328, 1
        %v542 = vsel %vm533, %v539, %v541
        %v543 = vrot.slane %v329, 1
        %v544 = vsel %vm533, %v541, %v543
        %v545 = vrot.slane %v330, 1
        %v546 = vsel %vm533, %v543, %v545
        %v547 = vrot.slane %v331, 1
        %v548 = vsel %vm533, %v545, %v547
        %v549 = vrot.slane %v332, 1
        %v550 = vsel %vm533, %v547, %v549
        %v551 = vrot.slane %v333, 1
        %v552 = vsel %vm533, %v549, %v551
        %v553 = vrot.slane %v334, 1
        %v554 = vsel %vm533, %v551, %v553
        %v555 = vrot.slane %v335, 1
        %v556 = vsel %vm533, %v553, %v555
        %v557 = vrot.slane %v336, 1
        %v558 = vsel %vm533, %v555, %v557
        %v559 = vrot.slane %v337, 1
        %v560 = vsel %vm533, %v557, %v559
        %v561 = vrot.slane %v338, 1
        %v562 = vsel %vm533, %v559, %v561
        %v563 = vrot.slane %v339, 1
        %v564 = vsel %vm533, %v561, %v563
        %v565 = vrot.slane %v340, 1
        %v566 = vsel %vm533, %v563, %v565
        %v567 = vrot.slane %v341, 1
        %v568 = vsel %vm533, %v565, %v567
        %v569 = vrot.slane %v344, 1
        %v570 = vsel %vm533, %v567, %v569
        %571 = vrot.lane.b32.xlu0 %v536, 8
        %v572 = vpop.permute.xlu0 %571
        %573 = vrot.lane.b32.xlu0 %v538, 8
        %v574 = vpop.permute.xlu0 %573
        %575 = vrot.lane.b32.xlu0 %v540, 8
        %v576 = vpop.permute.xlu0 %575
        %577 = vrot.lane.b32.xlu0 %v542, 8
        %v578 = vpop.permute.xlu0 %577
        %579 = vrot.lane.b32.xlu0 %v544, 8
        %v580 = vpop.permute.xlu0 %579
        %581 = vrot.lane.b32.xlu0 %v546, 8
        %v582 = vpop.permute.xlu0 %581
        %583 = vrot.lane.b32.xlu0 %v548, 8
        %v584 = vpop.permute.xlu0 %583
        %585 = vrot.lane.b32.xlu0 %v550, 8
        %v586 = vpop.permute.xlu0 %585
        %587 = vrot.lane.b32.xlu0 %v552, 8
        %v588 = vpop.permute.xlu0 %587
        %589 = vrot.lane.b32.xlu0 %v554, 8
        %v590 = vpop.permute.xlu0 %589
        %591 = vrot.lane.b32.xlu0 %v556, 8
        %v592 = vpop.permute.xlu0 %591
        %593 = vrot.lane.b32.xlu0 %v558, 8
        %v594 = vpop.permute.xlu0 %593
        %595 = vrot.lane.b32.xlu0 %v560, 8
        %v596 = vpop.permute.xlu0 %595
        %597 = vrot.lane.b32.xlu0 %v562, 8
        %v598 = vpop.permute.xlu0 %597
        %599 = vrot.lane.b32.xlu0 %v564, 8
        %v600 = vpop.permute.xlu0 %599
        %601 = vrot.lane.b32.xlu0 %v566, 8
        %v602 = vpop.permute.xlu0 %601
        %603 = vrot.lane.b32.xlu0 %v568, 8
        %v604 = vpop.permute.xlu0 %603
        %605 = vrot.lane.b32.xlu0 %v570, 8
        %v606 = vpop.permute.xlu0 %605
        %v611 = vunpack.c.l.b16 %v240
        %v612 = vunpack.c.l.b16 %v241
        %v613 = vunpack.c.l.b16 %v242
        %v614 = vunpack.c.l.b16 %v243
        %v615 = vpack.c.b16 %v291, %v611
        %v616 = vpack.c.b16 %v613, %v612
        %v617 = vpack.c.b16 %v614, %v614
        %v618 = vrot.slane %v615, 1
        %v619 = vsel %vm533, %v618, %v537
        %v620 = vrot.slane %v616, 1
        %v621 = vsel %vm533, %v567, %v620
        %v622 = vrot.slane %v617, 1
        %v623 = vsel %vm533, %v620, %v622
        %624 = vrot.lane.b32.xlu0 %v619, 12
        %v625 = vpop.permute.xlu0 %624
        %626 = vrot.lane.b32.xlu0 %v540, 12
        %v627 = vpop.permute.xlu0 %626
        %628 = vrot.lane.b32.xlu0 %v542, 12
        %v629 = vpop.permute.xlu0 %628
        %630 = vrot.lane.b32.xlu0 %v544, 12
        %v631 = vpop.permute.xlu0 %630
        %632 = vrot.lane.b32.xlu0 %v546, 12
        %v633 = vpop.permute.xlu0 %632
        %634 = vrot.lane.b32.xlu0 %v548, 12
        %v635 = vpop.permute.xlu0 %634
        %636 = vrot.lane.b32.xlu0 %v550, 12
        %v637 = vpop.permute.xlu0 %636
        %638 = vrot.lane.b32.xlu0 %v552, 12
        %v639 = vpop.permute.xlu0 %638
        %640 = vrot.lane.b32.xlu0 %v554, 12
        %v641 = vpop.permute.xlu0 %640
        %642 = vrot.lane.b32.xlu0 %v556, 12
        %v643 = vpop.permute.xlu0 %642
        %644 = vrot.lane.b32.xlu0 %v558, 12
        %v645 = vpop.permute.xlu0 %644
        %646 = vrot.lane.b32.xlu0 %v560, 12
        %v647 = vpop.permute.xlu0 %646
        %648 = vrot.lane.b32.xlu0 %v562, 12
        %v649 = vpop.permute.xlu0 %648
        %650 = vrot.lane.b32.xlu0 %v564, 12
        %v651 = vpop.permute.xlu0 %650
        %652 = vrot.lane.b32.xlu0 %v566, 12
        %v653 = vpop.permute.xlu0 %652
        %654 = vrot.lane.b32.xlu0 %v568, 12
        %v655 = vpop.permute.xlu0 %654
        %656 = vrot.lane.b32.xlu0 %v621, 12
        %v657 = vpop.permute.xlu0 %656
        %658 = vrot.lane.b32.xlu0 %v623, 12
        %v659 = vpop.permute.xlu0 %658
        %v661 = vunpack.c.l.b16 %v244
        %v662 = vpack.c.b16 %v661, %v661
        %vm663 = vsmask.f32 6400
        %v665 = vshrl.u32 %v615, 16
        %v667 = vrot.slane %v665, 1
        %v668 = vshll.u32 %v615, 16
        %v670 = vrot.slane %v668, 2
        %v671 = vor.u32 %v667, %v670
        %v672 = vrot.slane %v366, 1
        %v673 = vrot.slane %v362, 2
        %v674 = vor.u32 %v672, %v673
        %v675 = vsel %vm663, %v671, %v674
        %v676 = vrot.slane %v374, 1
        %v677 = vrot.slane %v370, 2
        %v678 = vor.u32 %v676, %v677
        %v679 = vsel %vm663, %v674, %v678
        %v680 = vrot.slane %v382, 1
        %v681 = vrot.slane %v378, 2
        %v682 = vor.u32 %v680, %v681
        %v683 = vsel %vm663, %v678, %v682
        %v684 = vrot.slane %v390, 1
        %v685 = vrot.slane %v386, 2
        %v686 = vor.u32 %v684, %v685
        %v687 = vsel %vm663, %v682, %v686
        %v688 = vrot.slane %v398, 1
        %v689 = vrot.slane %v394, 2
        %v690 = vor.u32 %v688, %v689
        %v691 = vsel %vm663, %v686, %v690
        %v692 = vrot.slane %v406, 1
        %v693 = vrot.slane %v402, 2
        %v694 = vor.u32 %v692, %v693
        %v695 = vsel %vm663, %v690, %v694
        %v696 = vrot.slane %v414, 1
        %v697 = vrot.slane %v410, 2
        %v698 = vor.u32 %v696, %v697
        %v699 = vsel %vm663, %v694, %v698
        %v700 = vrot.slane %v422, 1
        %v701 = vrot.slane %v418, 2
        %v702 = vor.u32 %v700, %v701
        %v703 = vsel %vm663, %v698, %v702
        %v704 = vrot.slane %v430, 1
        %v705 = vrot.slane %v426, 2
        %v706 = vor.u32 %v704, %v705
        %v707 = vsel %vm663, %v702, %v706
        %v708 = vrot.slane %v438, 1
        %v709 = vrot.slane %v434, 2
        %v710 = vor.u32 %v708, %v709
        %v711 = vsel %vm663, %v706, %v710
        %v712 = vrot.slane %v446, 1
        %v713 = vrot.slane %v442, 2
        %v714 = vor.u32 %v712, %v713
        %v715 = vsel %vm663, %v710, %v714
        %v716 = vrot.slane %v454, 1
        %v717 = vrot.slane %v450, 2
        %v718 = vor.u32 %v716, %v717
        %v719 = vsel %vm663, %v714, %v718
        %v720 = vrot.slane %v462, 1
        %v721 = vrot.slane %v458, 2
        %v722 = vor.u32 %v720, %v721
        %v723 = vsel %vm663, %v718, %v722
        %v724 = vrot.slane %v470, 1
        %v725 = vrot.slane %v466, 2
        %v726 = vor.u32 %v724, %v725
        %v727 = vsel %vm663, %v722, %v726
        %v728 = vrot.slane %v478, 1
        %v729 = vrot.slane %v474, 2
        %v730 = vor.u32 %v728, %v729
        %v731 = vsel %vm663, %v726, %v730
        %v732 = vrot.slane %v486, 1
        %v733 = vrot.slane %v482, 2
        %v734 = vor.u32 %v732, %v733
        %v735 = vsel %vm663, %v730, %v734
        %v737 = vshrl.u32 %v616, 16
        %v739 = vrot.slane %v737, 1
        %v740 = vshll.u32 %v616, 16
        %v742 = vrot.slane %v740, 2
        %v743 = vor.u32 %v739, %v742
        %v744 = vsel %vm663, %v734, %v743
        %v746 = vshrl.u32 %v662, 16
        %v748 = vrot.slane %v746, 1
        %v749 = vshll.u32 %v662, 16
        %v751 = vrot.slane %v749, 2
        %v752 = vor.u32 %v748, %v751
        %v753 = vsel %vm663, %v743, %v752
        %754 = vrot.lane.b32.xlu0 %v675, 16
        %v755 = vpop.permute.xlu0 %754
        %756 = vrot.lane.b32.xlu0 %v679, 16
        %v757 = vpop.permute.xlu0 %756
        %758 = vrot.lane.b32.xlu0 %v683, 16
        %v759 = vpop.permute.xlu0 %758
        %760 = vrot.lane.b32.xlu0 %v687, 16
        %v761 = vpop.permute.xlu0 %760
        %762 = vrot.lane.b32.xlu0 %v691, 16
        %v763 = vpop.permute.xlu0 %762
        %764 = vrot.lane.b32.xlu0 %v695, 16
        %v765 = vpop.permute.xlu0 %764
        %766 = vrot.lane.b32.xlu0 %v699, 16
        %v767 = vpop.permute.xlu0 %766
        %768 = vrot.lane.b32.xlu0 %v703, 16
        %v769 = vpop.permute.xlu0 %768
        %770 = vrot.lane.b32.xlu0 %v707, 16
        %v771 = vpop.permute.xlu0 %770
        %772 = vrot.lane.b32.xlu0 %v711, 16
        %v773 = vpop.permute.xlu0 %772
        %774 = vrot.lane.b32.xlu0 %v715, 16
        %v775 = vpop.permute.xlu0 %774
        %776 = vrot.lane.b32.xlu0 %v719, 16
        %v777 = vpop.permute.xlu0 %776
        %778 = vrot.lane.b32.xlu0 %v723, 16
        %v779 = vpop.permute.xlu0 %778
        %780 = vrot.lane.b32.xlu0 %v727, 16
        %v781 = vpop.permute.xlu0 %780
        %782 = vrot.lane.b32.xlu0 %v731, 16
        %v783 = vpop.permute.xlu0 %782
        %784 = vrot.lane.b32.xlu0 %v735, 16
        %v785 = vpop.permute.xlu0 %784
        %786 = vrot.lane.b32.xlu0 %v744, 16
        %v787 = vpop.permute.xlu0 %786
        %788 = vrot.lane.b32.xlu0 %v753, 16
        %v789 = vpop.permute.xlu0 %788
        %v791 = vunpack.c.l.b16 %v245
        %v792 = vpack.c.b16 %v291, %v791
        %vm793 = vcmask 1045504
        %v794 = vrot.slane %v792, 2
        %v795 = vrot.slane %v326, 2
        %v796 = vsel %vm793, %v794, %v795
        %v797 = vrot.slane %v327, 2
        %v798 = vsel %vm793, %v795, %v797
        %v799 = vrot.slane %v328, 2
        %v800 = vsel %vm793, %v797, %v799
        %v801 = vrot.slane %v329, 2
        %v802 = vsel %vm793, %v799, %v801
        %v803 = vrot.slane %v330, 2
        %v804 = vsel %vm793, %v801, %v803
        %v805 = vrot.slane %v331, 2
        %v806 = vsel %vm793, %v803, %v805
        %v807 = vrot.slane %v332, 2
        %v808 = vsel %vm793, %v805, %v807
        %v809 = vrot.slane %v333, 2
        %v810 = vsel %vm793, %v807, %v809
        %v811 = vrot.slane %v334, 2
        %v812 = vsel %vm793, %v809, %v811
        %v813 = vrot.slane %v335, 2
        %v814 = vsel %vm793, %v811, %v813
        %v815 = vrot.slane %v336, 2
        %v816 = vsel %vm793, %v813, %v815
        %v817 = vrot.slane %v337, 2
        %v818 = vsel %vm793, %v815, %v817
        %v819 = vrot.slane %v338, 2
        %v820 = vsel %vm793, %v817, %v819
        %v821 = vrot.slane %v339, 2
        %v822 = vsel %vm793, %v819, %v821
        %v823 = vrot.slane %v340, 2
        %v824 = vsel %vm793, %v821, %v823
        %v825 = vrot.slane %v341, 2
        %v826 = vsel %vm793, %v823, %v825
        %v827 = vrot.slane %v616, 2
        %v828 = vsel %vm793, %v825, %v827
        %v829 = vrot.slane %v662, 2
        %v830 = vsel %vm793, %v827, %v829
        %831 = vrot.lane.b32.xlu0 %v796, 20
        %v832 = vpop.permute.xlu0 %831
        %833 = vrot.lane.b32.xlu0 %v798, 20
        %v834 = vpop.permute.xlu0 %833
        %835 = vrot.lane.b32.xlu0 %v800, 20
        %v836 = vpop.permute.xlu0 %835
        %837 = vrot.lane.b32.xlu0 %v802, 20
        %v838 = vpop.permute.xlu0 %837
        %839 = vrot.lane.b32.xlu0 %v804, 20
        %v840 = vpop.permute.xlu0 %839
        %841 = vrot.lane.b32.xlu0 %v806, 20
        %v842 = vpop.permute.xlu0 %841
        %843 = vrot.lane.b32.xlu0 %v808, 20
        %v844 = vpop.permute.xlu0 %843
        %845 = vrot.lane.b32.xlu0 %v810, 20
        %v846 = vpop.permute.xlu0 %845
        %847 = vrot.lane.b32.xlu0 %v812, 20
        %v848 = vpop.permute.xlu0 %847
        %849 = vrot.lane.b32.xlu0 %v814, 20
        %v850 = vpop.permute.xlu0 %849
        %851 = vrot.lane.b32.xlu0 %v816, 20
        %v852 = vpop.permute.xlu0 %851
        %853 = vrot.lane.b32.xlu0 %v818, 20
        %v854 = vpop.permute.xlu0 %853
        %855 = vrot.lane.b32.xlu0 %v820, 20
        %v856 = vpop.permute.xlu0 %855
        %857 = vrot.lane.b32.xlu0 %v822, 20
        %v858 = vpop.permute.xlu0 %857
        %859 = vrot.lane.b32.xlu0 %v824, 20
        %v860 = vpop.permute.xlu0 %859
        %861 = vrot.lane.b32.xlu0 %v826, 20
        %v862 = vpop.permute.xlu0 %861
        %863 = vrot.lane.b32.xlu0 %v828, 20
        %v864 = vpop.permute.xlu0 %863
        %865 = vrot.lane.b32.xlu0 %v830, 20
        %v866 = vpop.permute.xlu0 %865
        %v871 = vunpack.c.l.b16 %v246
        %v872 = vunpack.c.l.b16 %v247
        %v873 = vunpack.c.l.b16 %v248
        %v874 = vunpack.c.l.b16 %v249
        %v875 = vpack.c.b16 %v293, %v871
        %v876 = vpack.c.b16 %v873, %v872
        %v877 = vpack.c.b16 %v874, %v874
        %v878 = vrot.slane %v875, 2
        %v879 = vsel %vm793, %v878, %v797
        %v880 = vrot.slane %v876, 2
        %v881 = vsel %vm793, %v827, %v880
        %v882 = vrot.slane %v877, 2
        %v883 = vsel %vm793, %v880, %v882
        %884 = vrot.lane.b32.xlu0 %v879, 24
        %v885 = vpop.permute.xlu0 %884
        %886 = vrot.lane.b32.xlu0 %v800, 24
        %v887 = vpop.permute.xlu0 %886
        %888 = vrot.lane.b32.xlu0 %v802, 24
        %v889 = vpop.permute.xlu0 %888
        %890 = vrot.lane.b32.xlu0 %v804, 24
        %v891 = vpop.permute.xlu0 %890
        %892 = vrot.lane.b32.xlu0 %v806, 24
        %v893 = vpop.permute.xlu0 %892
        %894 = vrot.lane.b32.xlu0 %v808, 24
        %v895 = vpop.permute.xlu0 %894
        %896 = vrot.lane.b32.xlu0 %v810, 24
        %v897 = vpop.permute.xlu0 %896
        %898 = vrot.lane.b32.xlu0 %v812, 24
        %v899 = vpop.permute.xlu0 %898
        %900 = vrot.lane.b32.xlu0 %v814, 24
        %v901 = vpop.permute.xlu0 %900
        %902 = vrot.lane.b32.xlu0 %v816, 24
        %v903 = vpop.permute.xlu0 %902
        %904 = vrot.lane.b32.xlu0 %v818, 24
        %v905 = vpop.permute.xlu0 %904
        %906 = vrot.lane.b32.xlu0 %v820, 24
        %v907 = vpop.permute.xlu0 %906
        %908 = vrot.lane.b32.xlu0 %v822, 24
        %v909 = vpop.permute.xlu0 %908
        %910 = vrot.lane.b32.xlu0 %v824, 24
        %v911 = vpop.permute.xlu0 %910
        %912 = vrot.lane.b32.xlu0 %v826, 24
        %v913 = vpop.permute.xlu0 %912
        %914 = vrot.lane.b32.xlu0 %v828, 24
        %v915 = vpop.permute.xlu0 %914
        %916 = vrot.lane.b32.xlu0 %v881, 24
        %v917 = vpop.permute.xlu0 %916
        %918 = vrot.lane.b32.xlu0 %v883, 24
        %v919 = vpop.permute.xlu0 %918
        %v921 = vunpack.c.l.b16 %v250
        %v922 = vpack.c.b16 %v921, %v921
        %vm923 = vsmask.f32 5376
        %v925 = vshrl.u32 %v875, 16
        %v927 = vrot.slane %v925, 2
        %v928 = vshll.u32 %v875, 16
        %v930 = vrot.slane %v928, 3
        %v931 = vor.u32 %v927, %v930
        %v932 = vrot.slane %v374, 2
        %v933 = vrot.slane %v370, 3
        %v934 = vor.u32 %v932, %v933
        %v935 = vsel %vm923, %v931, %v934
        %v936 = vrot.slane %v382, 2
        %v937 = vrot.slane %v378, 3
        %v938 = vor.u32 %v936, %v937
        %v939 = vsel %vm923, %v934, %v938
        %v940 = vrot.slane %v390, 2
        %v941 = vrot.slane %v386, 3
        %v942 = vor.u32 %v940, %v941
        %v943 = vsel %vm923, %v938, %v942
        %v944 = vrot.slane %v398, 2
        %v945 = vrot.slane %v394, 3
        %v946 = vor.u32 %v944, %v945
        %v947 = vsel %vm923, %v942, %v946
        %v948 = vrot.slane %v406, 2
        %v949 = vrot.slane %v402, 3
        %v950 = vor.u32 %v948, %v949
        %v951 = vsel %vm923, %v946, %v950
        %v952 = vrot.slane %v414, 2
        %v953 = vrot.slane %v410, 3
        %v954 = vor.u32 %v952, %v953
        %v955 = vsel %vm923, %v950, %v954
        %v956 = vrot.slane %v422, 2
        %v957 = vrot.slane %v418, 3
        %v958 = vor.u32 %v956, %v957
        %v959 = vsel %vm923, %v954, %v958
        %v960 = vrot.slane %v430, 2
        %v961 = vrot.slane %v426, 3
        %v962 = vor.u32 %v960, %v961
        %v963 = vsel %vm923, %v958, %v962
        %v964 = vrot.slane %v438, 2
        %v965 = vrot.slane %v434, 3
        %v966 = vor.u32 %v964, %v965
        %v967 = vsel %vm923, %v962, %v966
        %v968 = vrot.slane %v446, 2
        %v969 = vrot.slane %v442, 3
        %v970 = vor.u32 %v968, %v969
        %v971 = vsel %vm923, %v966, %v970
        %v972 = vrot.slane %v454, 2
        %v973 = vrot.slane %v450, 3
        %v974 = vor.u32 %v972, %v973
        %v975 = vsel %vm923, %v970, %v974
        %v976 = vrot.slane %v462, 2
        %v977 = vrot.slane %v458, 3
        %v978 = vor.u32 %v976, %v977
        %v979 = vsel %vm923, %v974, %v978
        %v980 = vrot.slane %v470, 2
        %v981 = vrot.slane %v466, 3
        %v982 = vor.u32 %v980, %v981
        %v983 = vsel %vm923, %v978, %v982
        %v984 = vrot.slane %v478, 2
        %v985 = vrot.slane %v474, 3
        %v986 = vor.u32 %v984, %v985
        %v987 = vsel %vm923, %v982, %v986
        %v988 = vrot.slane %v486, 2
        %v989 = vrot.slane %v482, 3
        %v990 = vor.u32 %v988, %v989
        %v991 = vsel %vm923, %v986, %v990
        %v992 = vrot.slane %v737, 2
        %v993 = vrot.slane %v740, 3
        %v994 = vor.u32 %v992, %v993
        %v995 = vsel %vm923, %v990, %v994
        %v997 = vshrl.u32 %v876, 16
        %v999 = vrot.slane %v997, 2
        %v1000 = vshll.u32 %v876, 16
        %v1002 = vrot.slane %v1000, 3
        %v1003 = vor.u32 %v999, %v1002
        %v1004 = vsel %vm923, %v994, %v1003
        %v1006 = vshrl.u32 %v922, 16
        %v1008 = vrot.slane %v1006, 2
        %v1009 = vshll.u32 %v922, 16
        %v1011 = vrot.slane %v1009, 3
        %v1012 = vor.u32 %v1008, %v1011
        %v1013 = vsel %vm923, %v1003, %v1012
        %1014 = vrot.lane.b32.xlu0 %v935, 28
        %v1015 = vpop.permute.xlu0 %1014
        %1016 = vrot.lane.b32.xlu0 %v939, 28
        %v1017 = vpop.permute.xlu0 %1016
        %1018 = vrot.lane.b32.xlu0 %v943, 28
        %v1019 = vpop.permute.xlu0 %1018
        %1020 = vrot.lane.b32.xlu0 %v947, 28
        %v1021 = vpop.permute.xlu0 %1020
        %1022 = vrot.lane.b32.xlu0 %v951, 28
        %v1023 = vpop.permute.xlu0 %1022
        %1024 = vrot.lane.b32.xlu0 %v955, 28
        %v1025 = vpop.permute.xlu0 %1024
        %1026 = vrot.lane.b32.xlu0 %v959, 28
        %v1027 = vpop.permute.xlu0 %1026
        %1028 = vrot.lane.b32.xlu0 %v963, 28
        %v1029 = vpop.permute.xlu0 %1028
        %1030 = vrot.lane.b32.xlu0 %v967, 28
        %v1031 = vpop.permute.xlu0 %1030
        %1032 = vrot.lane.b32.xlu0 %v971, 28
        %v1033 = vpop.permute.xlu0 %1032
        %1034 = vrot.lane.b32.xlu0 %v975, 28
        %v1035 = vpop.permute.xlu0 %1034
        %1036 = vrot.lane.b32.xlu0 %v979, 28
        %v1037 = vpop.permute.xlu0 %1036
        %1038 = vrot.lane.b32.xlu0 %v983, 28
        %v1039 = vpop.permute.xlu0 %1038
        %1040 = vrot.lane.b32.xlu0 %v987, 28
        %v1041 = vpop.permute.xlu0 %1040
        %1042 = vrot.lane.b32.xlu0 %v991, 28
        %v1043 = vpop.permute.xlu0 %1042
        %1044 = vrot.lane.b32.xlu0 %v995, 28
        %v1045 = vpop.permute.xlu0 %1044
        %1046 = vrot.lane.b32.xlu0 %v1004, 28
        %v1047 = vpop.permute.xlu0 %1046
        %1048 = vrot.lane.b32.xlu0 %v1013, 28
        %v1049 = vpop.permute.xlu0 %1048
        %v1051 = vunpack.c.l.b16 %v251
        %v1052 = vpack.c.b16 %v293, %v1051
        %vm1053 = vcmask 1044480
        %v1054 = vrot.slane %v1052, 3
        %v1055 = vrot.slane %v327, 3
        %v1056 = vsel %vm1053, %v1054, %v1055
        %v1057 = vrot.slane %v328, 3
        %v1058 = vsel %vm1053, %v1055, %v1057
        %v1059 = vrot.slane %v329, 3
        %v1060 = vsel %vm1053, %v1057, %v1059
        %v1061 = vrot.slane %v330, 3
        %v1062 = vsel %vm1053, %v1059, %v1061
        %v1063 = vrot.slane %v331, 3
        %v1064 = vsel %vm1053, %v1061, %v1063
        %v1065 = vrot.slane %v332, 3
        %v1066 = vsel %vm1053, %v1063, %v1065
        %v1067 = vrot.slane %v333, 3
        %v1068 = vsel %vm1053, %v1065, %v1067
        %v1069 = vrot.slane %v334, 3
        %v1070 = vsel %vm1053, %v1067, %v1069
        %v1071 = vrot.slane %v335, 3
        %v1072 = vsel %vm1053, %v1069, %v1071
        %v1073 = vrot.slane %v336, 3
        %v1074 = vsel %vm1053, %v1071, %v1073
        %v1075 = vrot.slane %v337, 3
        %v1076 = vsel %vm1053, %v1073, %v1075
        %v1077 = vrot.slane %v338, 3
        %v1078 = vsel %vm1053, %v1075, %v1077
        %v1079 = vrot.slane %v339, 3
        %v1080 = vsel %vm1053, %v1077, %v1079
        %v1081 = vrot.slane %v340, 3
        %v1082 = vsel %vm1053, %v1079, %v1081
        %v1083 = vrot.slane %v341, 3
        %v1084 = vsel %vm1053, %v1081, %v1083
        %v1085 = vrot.slane %v616, 3
        %v1086 = vsel %vm1053, %v1083, %v1085
        %v1087 = vrot.slane %v876, 3
        %v1088 = vsel %vm1053, %v1085, %v1087
        %v1089 = vrot.slane %v922, 3
        %v1090 = vsel %vm1053, %v1087, %v1089
        %1091 = vrot.lane.b32.xlu0 %v1056, 32
        %v1092 = vpop.permute.xlu0 %1091
        %1093 = vrot.lane.b32.xlu0 %v1058, 32
        %v1094 = vpop.permute.xlu0 %1093
        %1095 = vrot.lane.b32.xlu0 %v1060, 32
        %v1096 = vpop.permute.xlu0 %1095
        %1097 = vrot.lane.b32.xlu0 %v1062, 32
        %v1098 = vpop.permute.xlu0 %1097
        %1099 = vrot.lane.b32.xlu0 %v1064, 32
        %v1100 = vpop.permute.xlu0 %1099
        %1101 = vrot.lane.b32.xlu0 %v1066, 32
        %v1102 = vpop.permute.xlu0 %1101
        %1103 = vrot.lane.b32.xlu0 %v1068, 32
        %v1104 = vpop.permute.xlu0 %1103
        %1105 = vrot.lane.b32.xlu0 %v1070, 32
        %v1106 = vpop.permute.xlu0 %1105
        %1107 = vrot.lane.b32.xlu0 %v1072, 32
        %v1108 = vpop.permute.xlu0 %1107
        %1109 = vrot.lane.b32.xlu0 %v1074, 32
        %v1110 = vpop.permute.xlu0 %1109
        %1111 = vrot.lane.b32.xlu0 %v1076, 32
        %v1112 = vpop.permute.xlu0 %1111
        %1113 = vrot.lane.b32.xlu0 %v1078, 32
        %v1114 = vpop.permute.xlu0 %1113
        %1115 = vrot.lane.b32.xlu0 %v1080, 32
        %v1116 = vpop.permute.xlu0 %1115
        %1117 = vrot.lane.b32.xlu0 %v1082, 32
        %v1118 = vpop.permute.xlu0 %1117
        %1119 = vrot.lane.b32.xlu0 %v1084, 32
        %v1120 = vpop.permute.xlu0 %1119
        %1121 = vrot.lane.b32.xlu0 %v1086, 32
        %v1122 = vpop.permute.xlu0 %1121
        %1123 = vrot.lane.b32.xlu0 %v1088, 32
        %v1124 = vpop.permute.xlu0 %1123
        %1125 = vrot.lane.b32.xlu0 %v1090, 32
        %v1126 = vpop.permute.xlu0 %1125
        %vm1127 = vcmask 31744
        %v1129 = vsel %vm1127, %v324, %v495
        %v1131 = vsel %vm1127, %v325, %v497
        %v1133 = vsel %vm1127, %v326, %v499
        %v1135 = vsel %vm1127, %v327, %v501
        %v1137 = vsel %vm1127, %v328, %v503
        %v1139 = vsel %vm1127, %v329, %v505
        %v1141 = vsel %vm1127, %v330, %v507
        %v1143 = vsel %vm1127, %v331, %v509
        %v1145 = vsel %vm1127, %v332, %v511
        %v1147 = vsel %vm1127, %v333, %v513
        %v1149 = vsel %vm1127, %v334, %v515
        %v1151 = vsel %vm1127, %v335, %v517
        %v1153 = vsel %vm1127, %v336, %v519
        %v1155 = vsel %vm1127, %v337, %v521
        %v1157 = vsel %vm1127, %v338, %v523
        %v1159 = vsel %vm1127, %v339, %v525
        %v1161 = vsel %vm1127, %v340, %v527
        %v1163 = vsel %vm1127, %v341, %v529
        %vm1164 = vcmask 64512
        %v1166 = vsel %vm1164, %v1129, %v572
        %v1168 = vsel %vm1164, %v1131, %v574
        %v1170 = vsel %vm1164, %v1133, %v576
        %v1172 = vsel %vm1164, %v1135, %v578
        %v1174 = vsel %vm1164, %v1137, %v580
        %v1176 = vsel %vm1164, %v1139, %v582
        %v1178 = vsel %vm1164, %v1141, %v584
        %v1180 = vsel %vm1164, %v1143, %v586
        %v1182 = vsel %vm1164, %v1145, %v588
        %v1184 = vsel %vm1164, %v1147, %v590
        %v1186 = vsel %vm1164, %v1149, %v592
        %v1188 = vsel %vm1164, %v1151, %v594
        %v1190 = vsel %vm1164, %v1153, %v596
        %v1192 = vsel %vm1164, %v1155, %v598
        %v1194 = vsel %vm1164, %v1157, %v600
        %v1196 = vsel %vm1164, %v1159, %v602
        %v1198 = vsel %vm1164, %v1161, %v604
        %v1200 = vsel %vm1164, %v1163, %v606
        %vm1201 = vcmask 97280
        %v1203 = vsel %vm1201, %v1166, %v625
        %v1205 = vsel %vm1201, %v1168, %v627
        %v1207 = vsel %vm1201, %v1170, %v629
        %v1209 = vsel %vm1201, %v1172, %v631
        %v1211 = vsel %vm1201, %v1174, %v633
        %v1213 = vsel %vm1201, %v1176, %v635
        %v1215 = vsel %vm1201, %v1178, %v637
        %v1217 = vsel %vm1201, %v1180, %v639
        %v1219 = vsel %vm1201, %v1182, %v641
        %v1221 = vsel %vm1201, %v1184, %v643
        %v1223 = vsel %vm1201, %v1186, %v645
        %v1225 = vsel %vm1201, %v1188, %v647
        %v1227 = vsel %vm1201, %v1190, %v649
        %v1229 = vsel %vm1201, %v1192, %v651
        %v1231 = vsel %vm1201, %v1194, %v653
        %v1233 = vsel %vm1201, %v1196, %v655
        %v1235 = vsel %vm1201, %v1198, %v657
        %v1237 = vsel %vm1201, %v1200, %v659
        %vm1238 = vcmask 130048
        %v1240 = vsel %vm1238, %v1203, %v755
        %v1242 = vsel %vm1238, %v1205, %v757
        %v1244 = vsel %vm1238, %v1207, %v759
        %v1246 = vsel %vm1238, %v1209, %v761
        %v1248 = vsel %vm1238, %v1211, %v763
        %v1250 = vsel %vm1238, %v1213, %v765
        %v1252 = vsel %vm1238, %v1215, %v767
        %v1254 = vsel %vm1238, %v1217, %v769
        %v1256 = vsel %vm1238, %v1219, %v771
        %v1258 = vsel %vm1238, %v1221, %v773
        %v1260 = vsel %vm1238, %v1223, %v775
        %v1262 = vsel %vm1238, %v1225, %v777
        %v1264 = vsel %vm1238, %v1227, %v779
        %v1266 = vsel %vm1238, %v1229, %v781
        %v1268 = vsel %vm1238, %v1231, %v783
        %v1270 = vsel %vm1238, %v1233, %v785
        %v1272 = vsel %vm1238, %v1235, %v787
        %v1274 = vsel %vm1238, %v1237, %v789
        %vm1275 = vcmask 162816
        %v1277 = vsel %vm1275, %v1240, %v832
        %v1279 = vsel %vm1275, %v1242, %v834
        %v1281 = vsel %vm1275, %v1244, %v836
        %v1283 = vsel %vm1275, %v1246, %v838
        %v1285 = vsel %vm1275, %v1248, %v840
        %v1287 = vsel %vm1275, %v1250, %v842
        %v1289 = vsel %vm1275, %v1252, %v844
        %v1291 = vsel %vm1275, %v1254, %v846
        %v1293 = vsel %vm1275, %v1256, %v848
        %v1295 = vsel %vm1275, %v1258, %v850
        %v1297 = vsel %vm1275, %v1260, %v852
        %v1299 = vsel %vm1275, %v1262, %v854
        %v1301 = vsel %vm1275, %v1264, %v856
        %v1303 = vsel %vm1275, %v1266, %v858
        %v1305 = vsel %vm1275, %v1268, %v860
        %v1307 = vsel %vm1275, %v1270, %v862
        %v1309 = vsel %vm1275, %v1272, %v864
        %v1311 = vsel %vm1275, %v1274, %v866
        %vm1312 = vcmask 195584
        %v1314 = vsel %vm1312, %v1277, %v885
        %v1316 = vsel %vm1312, %v1279, %v887
        %v1318 = vsel %vm1312, %v1281, %v889
        %v1320 = vsel %vm1312, %v1283, %v891
        %v1322 = vsel %vm1312, %v1285, %v893
        %v1324 = vsel %vm1312, %v1287, %v895
        %v1326 = vsel %vm1312, %v1289, %v897
        %v1328 = vsel %vm1312, %v1291, %v899
        %v1330 = vsel %vm1312, %v1293, %v901
        %v1332 = vsel %vm1312, %v1295, %v903
        %v1334 = vsel %vm1312, %v1297, %v905
        %v1336 = vsel %vm1312, %v1299, %v907
        %v1338 = vsel %vm1312, %v1301, %v909
        %v1340 = vsel %vm1312, %v1303, %v911
        %v1342 = vsel %vm1312, %v1305, %v913
        %v1344 = vsel %vm1312, %v1307, %v915
        %v1346 = vsel %vm1312, %v1309, %v917
        %v1348 = vsel %vm1312, %v1311, %v919
        %vm1349 = vcmask 228352
        %v1351 = vsel %vm1349, %v1314, %v1015
        %v1353 = vsel %vm1349, %v1316, %v1017
        %v1355 = vsel %vm1349, %v1318, %v1019
        %v1357 = vsel %vm1349, %v1320, %v1021
        %v1359 = vsel %vm1349, %v1322, %v1023
        %v1361 = vsel %vm1349, %v1324, %v1025
        %v1363 = vsel %vm1349, %v1326, %v1027
        %v1365 = vsel %vm1349, %v1328, %v1029
        %v1367 = vsel %vm1349, %v1330, %v1031
        %v1369 = vsel %vm1349, %v1332, %v1033
        %v1371 = vsel %vm1349, %v1334, %v1035
        %v1373 = vsel %vm1349, %v1336, %v1037
        %v1375 = vsel %vm1349, %v1338, %v1039
        %v1377 = vsel %vm1349, %v1340, %v1041
        %v1379 = vsel %vm1349, %v1342, %v1043
        %v1381 = vsel %vm1349, %v1344, %v1045
        %v1383 = vsel %vm1349, %v1346, %v1047
        %v1385 = vsel %vm1349, %v1348, %v1049
        %vm1386 = vcmask 261120
        %v1388 = vsel %vm1386, %v1351, %v1092
        %v1390 = vsel %vm1386, %v1353, %v1094
        %v1392 = vsel %vm1386, %v1355, %v1096
        %v1394 = vsel %vm1386, %v1357, %v1098
        %v1396 = vsel %vm1386, %v1359, %v1100
        %v1398 = vsel %vm1386, %v1361, %v1102
        %v1400 = vsel %vm1386, %v1363, %v1104
        %v1402 = vsel %vm1386, %v1365, %v1106
        %v1404 = vsel %vm1386, %v1367, %v1108
        %v1406 = vsel %vm1386, %v1369, %v1110
        %v1408 = vsel %vm1386, %v1371, %v1112
        %v1410 = vsel %vm1386, %v1373, %v1114
        %v1412 = vsel %vm1386, %v1375, %v1116
        %v1414 = vsel %vm1386, %v1377, %v1118
        %v1416 = vsel %vm1386, %v1379, %v1120
        %v1418 = vsel %vm1386, %v1381, %v1122
        %v1420 = vsel %vm1386, %v1383, %v1124
        %v1422 = vsel %vm1386, %v1385, %v1126
        %v1423 = vld [vmem:[%s200] sm:$0xf]
        %v1424 = vld [vmem:[%s200 + $0x4] sm:$0xf]
        %v1425 = vld [vmem:[%s200 + $0x8] sm:$0xf]
        %v1426 = vld [vmem:[%s200 + $0xc] sm:$0xf]
        %v1427 = vld [vmem:[%s200 + $0x10] sm:$0x3]
        %s1428 = sld [smem:[#allocation2]]
        %v1429 = vstv %s1428
        %v1435 = vunpack.c.l.b16 %v1423
        %v1436 = vunpack.c.l.b16 %v1424
        %v1437 = vunpack.c.l.b16 %v1425
        %v1438 = vunpack.c.l.b16 %v1426
        %v1439 = vunpack.c.l.b16 %v1427
        %v1440 = vpack.c.b16 %v1436, %v1435
        %v1441 = vpack.c.b16 %v1438, %v1437
        %v1442 = vpack.c.b16 %v1439, %v1439
        %vm1445 = vcmask 293888
        %v1446 = vsel %vm1445, %v1388, 0
        %v1448 = vsel %vm1445, %v1390, 0
        %v1450 = vsel %vm1445, %v1392, 0
        %v1452 = vsel %vm1445, %v1394, 0
        %v1454 = vsel %vm1445, %v1396, 0
        %v1456 = vsel %vm1445, %v1398, 0
        %v1458 = vsel %vm1445, %v1400, 0
        %v1460 = vsel %vm1445, %v1402, 0
        %v1462 = vsel %vm1445, %v1404, 0
        %v1464 = vsel %vm1445, %v1406, 0
        %v1466 = vsel %vm1445, %v1408, 0
        %v1468 = vsel %vm1445, %v1410, 0
        %v1470 = vsel %vm1445, %v1412, 0
        %v1472 = vsel %vm1445, %v1414, 0
        %v1474 = vsel %vm1445, %v1416, 0
        %v1476 = vsel %vm1445, %v1418, 0
        %v1478 = vsel %vm1445, %v1420, 0
        %v1480 = vsel %vm1445, %v1422, 0
        %vm1482 = vcmask 1041408
        %v1484 = vsel %vm1482, %v1442, 0
        %1486 = vmatprep.subr.bf16.mxu0 0
        %1487 = vmatpush1.bf16.msra.mxu0 %v1440
        %1488 = vmatprep.subr.bf16.mxu0 0
        %1489 = vmatpush1.bf16.msra.mxu0 %v1441
        %1490 = vmatprep.subr.bf16.mxu0 0
        %1491 = vmatpush1.bf16.msra.mxu0 %v1484
        %1492 = vmatprep.subr.bf16.mxu0 0
        %1493 = vmatpush1.bf16.msra.mxu0 0
        %1494 = vmatprep.subr.bf16.mxu0 0
        %1495 = vmatpush1.bf16.msra.mxu0 0
        %1496 = vmatprep.subr.bf16.mxu0 0
        %1497 = vmatpush1.bf16.msra.mxu0 0
        %1498 = vmatprep.subr.bf16.mxu0 0
        %1499 = vmatpush1.bf16.msra.mxu0 0
        %1500 = vmatprep.subr.bf16.mxu0 0
        %1501 = vmatpush1.bf16.msra.mxu0 0
        %1502 = vmatprep.subr.bf16.mxu0 0
        %1503 = vmatpush1.bf16.msra.mxu0 0
        %1504 = vmatprep.subr.bf16.mxu0 0
        %1505 = vmatpush1.bf16.msra.mxu0 0
        %1506 = vmatprep.subr.bf16.mxu0 0
        %1507 = vmatpush1.bf16.msra.mxu0 0
        %1508 = vmatprep.subr.bf16.mxu0 0
        %1509 = vmatpush1.bf16.msra.mxu0 0
        %1510 = vmatprep.subr.bf16.mxu0 0
        %1511 = vmatpush1.bf16.msra.mxu0 0
        %1512 = vmatprep.subr.bf16.mxu0 0
        %1513 = vmatpush1.bf16.msra.mxu0 0
        %1514 = vmatprep.subr.bf16.mxu0 0
        %1515 = vmatpush1.bf16.msra.mxu0 0
        %1516 = vmatprep.subr.bf16.mxu0 0
        %1517 = vmatpush1.bf16.msra.mxu0 0
        %1518 = vmatprep.mubr.bf16.mxu0 0
        %1519 = vmatmul.mubr.bf16.gmra.mrb[0].mxu0 %v1446
        %v1520 = vpop.f32.mrb[0].mxu0
        %v1521 = vadd.f32 %v1429, %v1520
        %v1522 = vpop.f32.mrb[0].mxu0
        %v1523 = vpop.f32.mrb[0].mxu0
        %v1524 = vadd.f32 %v1429, %v1523
        %v1525 = vpop.f32.mrb[0].mxu0
        %1526 = vmatprep.mubr.bf16.mxu0 0
        %1527 = vmatmul.mubr.bf16.gmra.mrb[0].mxu0 %v1448
        %v1528 = vpop.f32.mrb[0].mxu0
        %v1529 = vadd.f32 %v1429, %v1528
        %v1530 = vpop.f32.mrb[0].mxu0
        %v1531 = vpop.f32.mrb[0].mxu0
        %v1532 = vadd.f32 %v1429, %v1531
        %v1533 = vpop.f32.mrb[0].mxu0
        %1534 = vmatprep.mubr.bf16.mxu0 0
        %1535 = vmatmul.mubr.bf16.gmra.mrb[0].mxu0 %v1450
        %v1536 = vpop.f32.mrb[0].mxu0
        %v1537 = vadd.f32 %v1429, %v1536
        %v1538 = vpop.f32.mrb[0].mxu0
        %v1539 = vpop.f32.mrb[0].mxu0
        %v1540 = vadd.f32 %v1429, %v1539
        %v1541 = vpop.f32.mrb[0].mxu0
        %1542 = vmatprep.mubr.bf16.mxu0 0
        %1543 = vmatmul.mubr.bf16.gmra.mrb[0].mxu0 %v1452
        %v1544 = vpop.f32.mrb[0].mxu0
        %v1545 = vadd.f32 %v1429, %v1544
        %v1546 = vpop.f32.mrb[0].mxu0
        %v1547 = vpop.f32.mrb[0].mxu0
        %v1548 = vadd.f32 %v1429, %v1547
        %v1549 = vpop.f32.mrb[0].mxu0
        %1550 = vmatprep.mubr.bf16.mxu0 0
        %1551 = vmatmul.mubr.bf16.gmra.mrb[0].mxu0 %v1454
        %v1552 = vpop.f32.mrb[0].mxu0
        %v1553 = vadd.f32 %v1429, %v1552
        %v1554 = vpop.f32.mrb[0].mxu0
        %v1555 = vpop.f32.mrb[0].mxu0
        %v1556 = vadd.f32 %v1429, %v1555
        %v1557 = vpop.f32.mrb[0].mxu0
        %1558 = vmatprep.mubr.bf16.mxu0 0
        %1559 = vmatmul.mubr.bf16.gmra.mrb[0].mxu0 %v1456
        %v1560 = vpop.f32.mrb[0].mxu0
        %v1561 = vadd.f32 %v1429, %v1560
        %v1562 = vpop.f32.mrb[0].mxu0
        %v1563 = vpop.f32.mrb[0].mxu0
        %v1564 = vadd.f32 %v1429, %v1563
        %v1565 = vpop.f32.mrb[0].mxu0
        %1566 = vmatprep.mubr.bf16.mxu0 0
        %1567 = vmatmul.mubr.bf16.gmra.mrb[0].mxu0 %v1458
        %v1568 = vpop.f32.mrb[0].mxu0
        %v1569 = vadd.f32 %v1429, %v1568
        %v1570 = vpop.f32.mrb[0].mxu0
        %v1571 = vpop.f32.mrb[0].mxu0
        %v1572 = vadd.f32 %v1429, %v1571
        %v1573 = vpop.f32.mrb[0].mxu0
        %1574 = vmatprep.mubr.bf16.mxu0 0
        %1575 = vmatmul.mubr.bf16.gmra.mrb[0].mxu0 %v1460
        %v1576 = vpop.f32.mrb[0].mxu0
        %v1577 = vadd.f32 %v1429, %v1576
        %v1578 = vpop.f32.mrb[0].mxu0
        %v1579 = vpop.f32.mrb[0].mxu0
        %v1580 = vadd.f32 %v1429, %v1579
        %v1581 = vpop.f32.mrb[0].mxu0
        %1582 = vmatprep.mubr.bf16.mxu0 0
        %1583 = vmatmul.mubr.bf16.gmra.mrb[0].mxu0 %v1462
        %v1584 = vpop.f32.mrb[0].mxu0
        %v1585 = vadd.f32 %v1429, %v1584
        %v1586 = vpop.f32.mrb[0].mxu0
        %v1587 = vpop.f32.mrb[0].mxu0
        %v1588 = vadd.f32 %v1429, %v1587
        %v1589 = vpop.f32.mrb[0].mxu0
        %1590 = vmatprep.mubr.bf16.mxu0 0
        %1591 = vmatmul.mubr.bf16.gmra.mrb[0].mxu0 %v1464
        %v1592 = vpop.f32.mrb[0].mxu0
        %v1593 = vadd.f32 %v1429, %v1592
        %v1594 = vpop.f32.mrb[0].mxu0
        %v1595 = vpop.f32.mrb[0].mxu0
        %v1596 = vadd.f32 %v1429, %v1595
        %v1597 = vpop.f32.mrb[0].mxu0
        %1598 = vmatprep.mubr.bf16.mxu0 0
        %1599 = vmatmul.mubr.bf16.gmra.mrb[0].mxu0 %v1466
        %v1600 = vpop.f32.mrb[0].mxu0
        %v1601 = vadd.f32 %v1429, %v1600
        %v1602 = vpop.f32.mrb[0].mxu0
        %v1603 = vpop.f32.mrb[0].mxu0
        %v1604 = vadd.f32 %v1429, %v1603
        %v1605 = vpop.f32.mrb[0].mxu0
        %1606 = vmatprep.mubr.bf16.mxu0 0
        %1607 = vmatmul.mubr.bf16.gmra.mrb[0].mxu0 %v1468
        %v1608 = vpop.f32.mrb[0].mxu0
        %v1609 = vadd.f32 %v1429, %v1608
        %v1610 = vpop.f32.mrb[0].mxu0
        %v1611 = vpop.f32.mrb[0].mxu0
        %v1612 = vadd.f32 %v1429, %v1611
        %v1613 = vpop.f32.mrb[0].mxu0
        %1614 = vmatprep.mubr.bf16.mxu0 0
        %1615 = vmatmul.mubr.bf16.gmra.mrb[0].mxu0 %v1470
        %v1616 = vpop.f32.mrb[0].mxu0
        %v1617 = vadd.f32 %v1429, %v1616
        %v1618 = vpop.f32.mrb[0].mxu0
        %v1619 = vpop.f32.mrb[0].mxu0
        %v1620 = vadd.f32 %v1429, %v1619
        %v1621 = vpop.f32.mrb[0].mxu0
        %1622 = vmatprep.mubr.bf16.mxu0 0
        %1623 = vmatmul.mubr.bf16.gmra.mrb[0].mxu0 %v1472
        %v1624 = vpop.f32.mrb[0].mxu0
        %v1625 = vadd.f32 %v1429, %v1624
        %v1626 = vpop.f32.mrb[0].mxu0
        %v1627 = vpop.f32.mrb[0].mxu0
        %v1628 = vadd.f32 %v1429, %v1627
        %v1629 = vpop.f32.mrb[0].mxu0
        %1630 = vmatprep.mubr.bf16.mxu0 0
        %1631 = vmatmul.mubr.bf16.gmra.mrb[0].mxu0 %v1474
        %v1632 = vpop.f32.mrb[0].mxu0
        %v1633 = vadd.f32 %v1429, %v1632
        %v1634 = vpop.f32.mrb[0].mxu0
        %v1635 = vpop.f32.mrb[0].mxu0
        %v1636 = vadd.f32 %v1429, %v1635
        %v1637 = vpop.f32.mrb[0].mxu0
        %1638 = vmatprep.mubr.bf16.mxu0 0
        %1639 = vmatmul.mubr.bf16.gmra.mrb[0].mxu0 %v1476
        %v1640 = vpop.f32.mrb[0].mxu0
        %v1641 = vadd.f32 %v1429, %v1640
        %v1642 = vpop.f32.mrb[0].mxu0
        %v1643 = vpop.f32.mrb[0].mxu0
        %v1644 = vadd.f32 %v1429, %v1643
        %v1645 = vpop.f32.mrb[0].mxu0
        %1646 = vmatprep.mubr.bf16.mxu0 0
        %1647 = vmatmul.mubr.bf16.gmra.mrb[0].mxu0 %v1478
        %v1648 = vpop.f32.mrb[0].mxu0
        %v1649 = vadd.f32 %v1429, %v1648
        %v1650 = vpop.f32.mrb[0].mxu0
        %v1651 = vpop.f32.mrb[0].mxu0
        %v1652 = vadd.f32 %v1429, %v1651
        %v1653 = vpop.f32.mrb[0].mxu0
        %1654 = vmatprep.mubr.bf16.mxu0 0
        %1655 = vmatmul.mubr.bf16.gmra.mrb[0].mxu0 %v1480
        %v1656 = vpop.f32.mrb[0].mxu0
        %v1657 = vadd.f32 %v1429, %v1656
        %v1658 = vpop.f32.mrb[0].mxu0
        %v1659 = vpop.f32.mrb[0].mxu0
        %v1660 = vadd.f32 %v1429, %v1659
        %v1661 = vpop.f32.mrb[0].mxu0
        %1662 = vdwg.mxu0
        %v1663 = vpack.c.bf16 %v1524, %v1521
        %v1664 = vpack.c.bf16 %v1532, %v1529
        %v1665 = vpack.c.bf16 %v1540, %v1537
        %v1666 = vpack.c.bf16 %v1548, %v1545
        %v1667 = vpack.c.bf16 %v1556, %v1553
        %v1668 = vpack.c.bf16 %v1564, %v1561
        %v1669 = vpack.c.bf16 %v1572, %v1569
        %v1670 = vpack.c.bf16 %v1580, %v1577
        %v1671 = vpack.c.bf16 %v1588, %v1585
        %v1672 = vpack.c.bf16 %v1596, %v1593
        %v1673 = vpack.c.bf16 %v1604, %v1601
        %v1674 = vpack.c.bf16 %v1612, %v1609
        %v1675 = vpack.c.bf16 %v1620, %v1617
        %v1676 = vpack.c.bf16 %v1628, %v1625
        %v1677 = vpack.c.bf16 %v1636, %v1633
        %v1678 = vpack.c.bf16 %v1644, %v1641
        %v1679 = vpack.c.bf16 %v1652, %v1649
        %v1680 = vpack.c.bf16 %v1660, %v1657
        %v1699 = vunpack.c.l.b16 %v1663
        %v1700 = vunpack.c.h.b16 %v1663
        %v1701 = vunpack.c.l.b16 %v1664
        %v1702 = vunpack.c.h.b16 %v1664
        %v1703 = vunpack.c.l.b16 %v1665
        %v1704 = vunpack.c.h.b16 %v1665
        %v1705 = vunpack.c.l.b16 %v1666
        %v1706 = vunpack.c.h.b16 %v1666
        %v1707 = vunpack.c.l.b16 %v1667
        %v1708 = vunpack.c.h.b16 %v1667
        %v1709 = vunpack.c.l.b16 %v1668
        %v1710 = vunpack.c.h.b16 %v1668
        %v1711 = vunpack.c.l.b16 %v1669
        %v1712 = vunpack.c.h.b16 %v1669
        %v1713 = vunpack.c.l.b16 %v1670
        %v1714 = vunpack.c.h.b16 %v1670
        %v1715 = vunpack.c.l.b16 %v1671
        %v1716 = vunpack.c.h.b16 %v1671
        %v1717 = vunpack.c.l.b16 %v1672
        %v1718 = vunpack.c.h.b16 %v1672
        %v1719 = vunpack.c.l.b16 %v1673
        %v1720 = vunpack.c.h.b16 %v1673
        %v1721 = vunpack.c.l.b16 %v1674
        %v1722 = vunpack.c.h.b16 %v1674
        %v1723 = vunpack.c.l.b16 %v1675
        %v1724 = vunpack.c.h.b16 %v1675
        %v1725 = vunpack.c.l.b16 %v1676
        %v1726 = vunpack.c.h.b16 %v1676
        %v1727 = vunpack.c.l.b16 %v1677
        %v1728 = vunpack.c.h.b16 %v1677
        %v1729 = vunpack.c.l.b16 %v1678
        %v1730 = vunpack.c.h.b16 %v1678
        %v1731 = vunpack.c.l.b16 %v1679
        %v1732 = vunpack.c.h.b16 %v1679
        %v1733 = vunpack.c.l.b16 %v1680
        %v1734 = vunpack.c.h.b16 %v1680
        %v1735 = vpack.c.b16 %v1699, %v1699
        %v1736 = vpack.c.b16 %v1700, %v1700
        %v1737 = vpack.c.b16 %v1701, %v1701
        %v1738 = vpack.c.b16 %v1702, %v1702
        %v1739 = vpack.c.b16 %v1703, %v1703
        %v1740 = vpack.c.b16 %v1704, %v1704
        %v1741 = vpack.c.b16 %v1705, %v1705
        %v1742 = vpack.c.b16 %v1706, %v1706
        %v1743 = vpack.c.b16 %v1707, %v1707
        %v1744 = vpack.c.b16 %v1708, %v1708
        %v1745 = vpack.c.b16 %v1709, %v1709
        %v1746 = vpack.c.b16 %v1710, %v1710
        %v1747 = vpack.c.b16 %v1711, %v1711
        %v1748 = vpack.c.b16 %v1712, %v1712
        %v1749 = vpack.c.b16 %v1713, %v1713
        %v1750 = vpack.c.b16 %v1714, %v1714
        %v1751 = vpack.c.b16 %v1715, %v1715
        %v1752 = vpack.c.b16 %v1716, %v1716
        %v1753 = vpack.c.b16 %v1717, %v1717
        %v1754 = vpack.c.b16 %v1718, %v1718
        %v1755 = vpack.c.b16 %v1719, %v1719
        %v1756 = vpack.c.b16 %v1720, %v1720
        %v1757 = vpack.c.b16 %v1721, %v1721
        %v1758 = vpack.c.b16 %v1722, %v1722
        %v1759 = vpack.c.b16 %v1723, %v1723
        %v1760 = vpack.c.b16 %v1724, %v1724
        %v1761 = vpack.c.b16 %v1725, %v1725
        %v1762 = vpack.c.b16 %v1726, %v1726
        %v1763 = vpack.c.b16 %v1727, %v1727
        %v1764 = vpack.c.b16 %v1728, %v1728
        %v1765 = vpack.c.b16 %v1729, %v1729
        %v1766 = vpack.c.b16 %v1730, %v1730
        %v1767 = vpack.c.b16 %v1731, %v1731
        %v1768 = vpack.c.b16 %v1732, %v1732
        %v1769 = vpack.c.b16 %v1733, %v1733
        %v1770 = vpack.c.b16 %v1734, %v1734
        %1807 = vst [vmem:[%s191] sm:$0xf] %v1735
        %1808 = vst [vmem:[%s191 + $0x4] sm:$0xf] %v1736
        %1809 = vst [vmem:[%s191 + $0x8] sm:$0xf] %v1737
        %1810 = vst [vmem:[%s191 + $0xc] sm:$0xf] %v1738
        %1811 = vst [vmem:[%s191 + $0x10] sm:$0xf] %v1739
        %1812 = vst [vmem:[%s191 + $0x14] sm:$0xf] %v1740
        %1813 = vst [vmem:[%s191 + $0x18] sm:$0xf] %v1741
        %1814 = vst [vmem:[%s191 + $0x1c] sm:$0xf] %v1742
        %1815 = vst [vmem:[%s191 + $0x20] sm:$0xf] %v1743
        %1816 = vst [vmem:[%s191 + $0x24] sm:$0xf] %v1744
        %1817 = vst [vmem:[%s191 + $0x28] sm:$0xf] %v1745
        %1818 = vst [vmem:[%s191 + $0x2c] sm:$0xf] %v1746
        %1819 = vst [vmem:[%s191 + $0x30] sm:$0xf] %v1747
        %1820 = vst [vmem:[%s191 + $0x34] sm:$0xf] %v1748
        %1821 = vst [vmem:[%s191 + $0x38] sm:$0xf] %v1749
        %1822 = vst [vmem:[%s191 + $0x3c] sm:$0xf] %v1750
        %1823 = vst [vmem:[%s191 + $0x40] sm:$0xf] %v1751
        %1824 = vst [vmem:[%s191 + $0x44] sm:$0xf] %v1752
        %1825 = vst [vmem:[%s191 + $0x48] sm:$0xf] %v1753
        %1826 = vst [vmem:[%s191 + $0x4c] sm:$0xf] %v1754
        %1827 = vst [vmem:[%s191 + $0x50] sm:$0xf] %v1755
        %1828 = vst [vmem:[%s191 + $0x54] sm:$0xf] %v1756
        %1829 = vst [vmem:[%s191 + $0x58] sm:$0xf] %v1757
        %1830 = vst [vmem:[%s191 + $0x5c] sm:$0xf] %v1758
        %1831 = vst [vmem:[%s191 + $0x60] sm:$0xf] %v1759
        %1832 = vst [vmem:[%s191 + $0x64] sm:$0xf] %v1760
        %1833 = vst [vmem:[%s191 + $0x68] sm:$0xf] %v1761
        %1834 = vst [vmem:[%s191 + $0x6c] sm:$0xf] %v1762
        %1835 = vst [vmem:[%s191 + $0x70] sm:$0xf] %v1763
        %1836 = vst [vmem:[%s191 + $0x74] sm:$0xf] %v1764
        %1837 = vst [vmem:[%s191 + $0x78] sm:$0xf] %v1765
        %1838 = vst [vmem:[%s191 + $0x7c] sm:$0xf] %v1766
        %1839 = vst [vmem:[%s191 + $0x80] sm:$0xf] %v1767
        %1840 = vst [vmem:[%s191 + $0x84] sm:$0xf] %v1768
        %1841 = vst [vmem:[%s191 + $0x88] sm:$0xf] %v1769
        %1842 = vst [vmem:[%s191 + $0x8c] sm:$0xf] %v1770
        %s1843 = sand.u32 %s113, 1
        %s1844 = scalar_lea.sflag [#allocation4], %s1843
        %s1845 = sand.u32 %s113, 1
        %s1846 = smul.addr %s1845, 144
        %s1847 = scalar_lea.vmem [#allocation3], %s1846
        // Predicated region
        $region33: #{tpu_custom_call.1} parent=31 // pred_check
          %p1848 = pneg %p123
        $region34: #{tpu_custom_call.1} parent=31 // pred_check_branch
          %1850 = sbr.rel (%p1848) target = $region36
        $region35: #{tpu_custom_call.1} parent=31 // pred_region
          %s1852 = ssub.s32 2304, 2304
          %1853 = vsyncadd %s1844, %s1852
          %s1854 = smul.addr %s22, 36
          %s1855 = sadd.s32 %s23, %s1854
          %s1856 = smul.addr %s1855, 64
          %s1857 = scalar_lea.hbm %s3, %s1856
          %s1858 = sshll.u32 %s1847, 4
          %s1859 = int_to_ptr.vmem [resolvable:$true] %s1858
          %1864 = dma.vmem_to_hbm [thread:$0]  %s1859, 2304, %s1857, %s1844, 64, 64, 4
        $region36: #{tpu_custom_call.1} parent=31 // pred_fallthru
          _
      $region32: #{tpu_custom_call.1} parent=5 // pred_fallthru
        _
      %p1865 = scmp.le.s32.totalorder 2, %s13
      // Predicated region
      $region37: #{tpu_custom_call.1} parent=5 // pred_check
        %p1866 = pneg %p1865
      $region38: #{tpu_custom_call.1} parent=5 // pred_check_branch
        %1868 = sbr.rel (%p1866) target = $region40
      $region39: #{tpu_custom_call.1} parent=5 // pred_region
        %s1869 = ssub.s32 %s13, 2
        // Predicated region
        $region41: #{tpu_custom_call.1} parent=39 // pred_check
          %p1870 = pneg %p129
        $region42: #{tpu_custom_call.1} parent=39 // pred_check_branch
          %1872 = sbr.rel (%p1870) target = $region44
        $region43: #{tpu_custom_call.1} parent=39 // pred_region
          %s1873 = sand.u32 %s114, 1
          %s1874 = scalar_lea.sflag [#allocation4], %s1873
          %s1875 = sand.u32 %s114, 1
          %s1876 = smul.addr %s1875, 144
          %s1877 = scalar_lea.vmem [#allocation3], %s1876
          %1878 = dma.done %s1874, 2304
        $region44: #{tpu_custom_call.1} parent=39 // pred_fallthru
          _
      $region40: #{tpu_custom_call.1} parent=5 // pred_fallthru
        _
    $region6: #{tpu_custom_call.1} parent=1 // loop_footer
      %s17 = sadd.s32 1, %s13
    $region7: #{tpu_custom_call.1} parent=1 // loop_footer_branch
      %12 = sbr.rel target = $region3
    $region8: #{tpu_custom_call.1} parent=1 // loop_exit
      _
    %1879 = vsyncpa [#allocation4], 1
    %s1880 = scalar_lea.sflag [#allocation4], 1
    %1881 = vsyncpa %s1880, 1

</llo_original>
